<compile_context>
chip_gen: v7x
topology: tpu7x:2x2x1
jax: 0.10.0
libtpu: 0.0.40
codegen_flags: <defaults>
</compile_context>

<pallas_src>
import jax
import jax.numpy as jnp
from jax.experimental import pallas as pl
from jax.experimental.pallas import tpu as pltpu

LANE = 128  # lane-dense padded tag width


# ----------------------------- kernel -------------------------------------- #

def _make_heads_kernel(with_mask):
    """Fused kernel: starts/ends heads (with in-kernel (S,T)->(T,S) transpose
    and optional additive mask) plus the cls/pooled tags head."""

    def kernel(pool_ref, xs_ref, xe_ref,
               wt_ref, bt_ref, ws_ref, bs_ref, we_ref, be_ref, *rest):
        if with_mask:
            m_ref, ot_ref, os_ref, oe_ref = rest
        else:
            ot_ref, os_ref, oe_ref = rest

        xs = xs_ref[0]                                      # (tile, H)
        xe = xe_ref[0]                                      # (tile, H)

        ys = jnp.dot(xs, ws_ref[...],
                     preferred_element_type=jnp.float32) + bs_ref[...]
        ye = jnp.dot(xe, we_ref[...],
                     preferred_element_type=jnp.float32) + be_ref[...]

        ys_t = ys.T                                         # (LANE, tile) XLU
        ye_t = ye.T
        if with_mask:
            m = m_ref[0]                                    # (1, tile)
            ys_t = ys_t + m                                 # bcast over tags
            ye_t = ye_t + m
        os_ref[0] = ys_t.astype(os_ref.dtype)
        oe_ref[0] = ye_t.astype(oe_ref.dtype)

        # cls / pooled tags head: one (1, H) row per batch; compute only on the
        # first seq tile — the resident output block is written back at the end.
        @pl.when(pl.program_id(1) == 0)
        def _():
            yt = jnp.dot(pool_ref[0], wt_ref[...],
                         preferred_element_type=jnp.float32) + bt_ref[...]
            ot_ref[0] = yt.astype(ot_ref.dtype)

    return kernel


# ----------------------------- wrapper -------------------------------------- #

def _seq_tile(seq_len):
    """Sequence tile: full S when small (single grid step per batch row — no
    per-step overhead on single-TC v5e/v6e), else the largest aligned divisor."""
    if seq_len <= 512:
        return seq_len
    for t in (512, 256, 128):
        if seq_len % t == 0:
            return t
    return seq_len


def evaluation_model_forward(encoder_outs, softmax_mask, params):
    """Pallas forward for Evaluation_Model's head path.

    encoder_outs:
      'cls_pooled' : (B, H)    pooled output  (x[1]) of the `cls`   sub-model
      'start_seq'  : (B, S, H) sequence out   (x[0]) of the `start` sub-model
      'end_seq'    : (B, S, H) sequence out   (x[0]) of the `end`   sub-model
    softmax_mask : (B, S) additive mask (broadcast over tags), or None
    params: 128-lane-padded heads 'tags_w','tags_b','starts_w','starts_b',
            'ends_w','ends_b' and 'num_tags'.
    Returns (p_tags (B,T), p_starts (B,T,S), p_ends (B,T,S)).
    """
    num_tags = params["num_tags"]
    pooled = encoder_outs["cls_pooled"]
    seq_s = encoder_outs["start_seq"]
    seq_e = encoder_outs["end_seq"]
    B, S, H = seq_s.shape
    tile = _seq_tile(S)
    assert S % tile == 0
    grid = (B, S // tile)
    with_mask = softmax_mask is not None

    # free (metadata-only) reshape: give the pooled rows a block-friendly rank.
    pooled3 = pooled.reshape(B, 1, H)

    in_specs = [
        pl.BlockSpec((1, 1, H), lambda b, s: (b, 0, 0)),       # pooled row
        pl.BlockSpec((1, tile, H), lambda b, s: (b, s, 0)),    # start seq tile
        pl.BlockSpec((1, tile, H), lambda b, s: (b, s, 0)),    # end   seq tile
        pl.BlockSpec((H, LANE), lambda b, s: (0, 0)),          # tags W (resident)
        pl.BlockSpec((1, LANE), lambda b, s: (0, 0)),          # tags b
        pl.BlockSpec((H, LANE), lambda b, s: (0, 0)),          # starts W
        pl.BlockSpec((1, LANE), lambda b, s: (0, 0)),          # starts b
        pl.BlockSpec((H, LANE), lambda b, s: (0, 0)),          # ends W
        pl.BlockSpec((1, LANE), lambda b, s: (0, 0)),          # ends b
    ]
    args = [pooled3, seq_s, seq_e,
            params["tags_w"], params["tags_b"],
            params["starts_w"], params["starts_b"],
            params["ends_w"], params["ends_b"]]
    if with_mask:
        in_specs.append(pl.BlockSpec((1, 1, tile), lambda b, s: (b, 0, s)))
        args.append(softmax_mask.astype(jnp.float32).reshape(B, 1, S))

    out_shape = (
        jax.ShapeDtypeStruct((B, 1, LANE), jnp.float32),    # padded tags
        jax.ShapeDtypeStruct((B, LANE, S), jnp.float32),    # padded (T, S) starts
        jax.ShapeDtypeStruct((B, LANE, S), jnp.float32),    # padded (T, S) ends
    )
    out_specs = (
        pl.BlockSpec((1, 1, LANE), lambda b, s: (b, 0, 0)),
        pl.BlockSpec((1, LANE, tile), lambda b, s: (b, 0, s)),
        pl.BlockSpec((1, LANE, tile), lambda b, s: (b, 0, s)),
    )

    tags_pad, starts_pad, ends_pad = pl.pallas_call(
        _make_heads_kernel(with_mask),
        out_shape=out_shape,
        grid_spec=pltpu.PrefetchScalarGridSpec(
            num_scalar_prefetch=0,
            grid=grid,
            in_specs=in_specs,
            out_specs=out_specs,
        ),
        compiler_params=pltpu.CompilerParams(
            # batch axis shards across v7x's two TensorCores (no-op on v5e/v6e);
            # seq axis is the revisit axis for the resident tags output block.
            dimension_semantics=("parallel", "arbitrary")),
    )(*args)

    # Slice off the zero-padded tag lanes; never expose the LANE-wide buffers.
    p_tags = tags_pad[:, 0, :num_tags]
    p_starts = starts_pad[:, :num_tags, :]
    p_ends = ends_pad[:, :num_tags, :]
    return p_tags, p_starts, p_ends


# ----------------------------- params / reference --------------------------- #

def _pad_head(w, b, tpad=LANE):
    """(H, T) weight / (T,) bias -> zero-padded (H, tpad) / (1, tpad)."""
    H, T = w.shape
    w_p = jnp.zeros((H, tpad), w.dtype).at[:, :T].set(w)
    b_p = jnp.zeros((1, tpad), b.dtype).at[0, :T].set(b)
    return w_p, b_p


def init_params(key, hidden_dim=768, num_tags=20):
    """Synthetic head weights (torch Linear(768, num_tags), stored as (H, T))."""
    scale = float(hidden_dim) ** -0.5
    raw, padded = {}, {"num_tags": num_tags}
    for name, k in zip(("tags", "starts", "ends"), jax.random.split(key, 3)):
        kw, kb = jax.random.split(k)
        w = jax.random.normal(kw, (hidden_dim, num_tags), jnp.float32) * scale
        b = jax.random.normal(kb, (num_tags,), jnp.float32) * scale
        raw[name + "_w"], raw[name + "_b"] = w, b
        padded[name + "_w"], padded[name + "_b"] = _pad_head(w, b)
    return raw, padded


def _reference(encoder_outs, softmax_mask, raw):
    """Pure-JAX reference mirroring the PyTorch head math."""
    pooled = encoder_outs["cls_pooled"]
    seq_s = encoder_outs["start_seq"]
    seq_e = encoder_outs["end_seq"]
    p_tags = pooled @ raw["tags_w"] + raw["tags_b"]
    starts = seq_s @ raw["starts_w"] + raw["starts_b"]       # (B, S, T)
    ends = seq_e @ raw["ends_w"] + raw["ends_b"]             # (B, S, T)
    p_starts = jnp.transpose(starts, (0, 2, 1))              # (B, T, S)
    p_ends = jnp.transpose(ends, (0, 2, 1))
    if softmax_mask is not None:
        m = softmax_mask[:, None, :]
        p_starts = p_starts + m
        p_ends = p_ends + m
    return p_tags, p_starts, p_ends


# ----------------------------- main ------------------------------------------ #

if __name__ == "__main__":
    # Small shapes consistent with the module: batch=2, seq=128,
    # hidden_dim=768 (fixed by Linear(768, num_tags)), num_tags=20.
    B, S, H, T = 2, 128, 768, 20

    key = jax.random.PRNGKey(0)
    k_cls, k_start, k_end, k_par = jax.random.split(key, 4)

    # Stand-ins for the three ALBERT backbones' outputs (see TODO above).
    encoder_outs = {
        "cls_pooled": jax.random.normal(k_cls, (B, H), jnp.float32),
        "start_seq": jax.random.normal(k_start, (B, S, H), jnp.float32),
        "end_seq": jax.random.normal(k_end, (B, S, H), jnp.float32),
    }

    # Additive softmax mask: 0 on valid tokens, -1e4 on padded tokens.
    lengths = jnp.array([[S], [S - 32]], jnp.int32)
    valid = (jnp.arange(S)[None, :] < lengths).astype(jnp.float32)
    softmax_mask = (1.0 - valid) * (-1e4)

    raw_params, params = init_params(k_par, hidden_dim=H, num_tags=T)

    # --- masked path (Evaluation_Model.forward with softmax_mask) ---
    p_tags, p_starts, p_ends = evaluation_model_forward(
        encoder_outs, softmax_mask, params)
    p_tags, p_starts, p_ends = jax.block_until_ready(
        (p_tags, p_starts, p_ends))

    r_tags, r_starts, r_ends = _reference(encoder_outs, softmax_mask,
                                          raw_params)

    assert p_tags.shape == (B, T)
    assert p_starts.shape == (B, T, S)
    assert p_ends.shape == (B, T, S)
    assert jnp.allclose(p_tags, r_tags, atol=2e-3, rtol=2e-3)
    assert jnp.allclose(p_starts, r_starts, atol=2e-3, rtol=2e-3)
    assert jnp.allclose(p_ends, r_ends, atol=2e-3, rtol=2e-3)

    # --- unmasked path (softmax_mask=None branch of the module) ---
    n_tags, n_starts, n_ends = jax.block_until_ready(
        evaluation_model_forward(encoder_outs, None, params))
    q_tags, q_starts, q_ends = _reference(encoder_outs, None, raw_params)
    assert jnp.allclose(n_tags, q_tags, atol=2e-3, rtol=2e-3)
    assert jnp.allclose(n_starts, q_starts, atol=2e-3, rtol=2e-3)
    assert jnp.allclose(n_ends, q_ends, atol=2e-3, rtol=2e-3)

    print("KERNEL_OK")
</pallas_src>

<mosaic_0001>
module attributes {stable_mosaic.version = 11 : i64} {
  func.func @kernel(%arg0: i32, %arg1: i32, %arg2: memref<1x1x768xf32, #tpu.memory_space<vmem>>, %arg3: memref<1x128x768xf32, #tpu.memory_space<vmem>>, %arg4: memref<1x128x768xf32, #tpu.memory_space<vmem>>, %arg5: memref<768x128xf32, #tpu.memory_space<vmem>>, %arg6: memref<1x128xf32, #tpu.memory_space<vmem>>, %arg7: memref<768x128xf32, #tpu.memory_space<vmem>>, %arg8: memref<1x128xf32, #tpu.memory_space<vmem>>, %arg9: memref<768x128xf32, #tpu.memory_space<vmem>>, %arg10: memref<1x128xf32, #tpu.memory_space<vmem>>, %arg11: memref<1x1x128xf32, #tpu.memory_space<vmem>>, %arg12: memref<1x1x128xf32, #tpu.memory_space<vmem>>, %arg13: memref<1x128x128xf32, #tpu.memory_space<vmem>>, %arg14: memref<1x128x128xf32, #tpu.memory_space<vmem>>) attributes {dimension_semantics = [#tpu.dimension_semantics<parallel>, #tpu.dimension_semantics<arbitrary>], iteration_bounds = array<i64: 2, 1>, scalar_prefetch = 0 : i64, scratch_operands = 0 : i64, tpu.core_type = #tpu.core_type<tc>, window_params = [{transform_indices = @transform_0, window_bounds = array<i64: 1, 1, 768>}, {transform_indices = @transform_1, window_bounds = array<i64: 1, 128, 768>}, {transform_indices = @transform_2, window_bounds = array<i64: 1, 128, 768>}, {pipeline_mode = #tpu.pipeline_mode<synchronous>, transform_indices = @transform_3, window_bounds = array<i64: 768, 128>}, {pipeline_mode = #tpu.pipeline_mode<synchronous>, transform_indices = @transform_4, window_bounds = array<i64: 1, 128>}, {pipeline_mode = #tpu.pipeline_mode<synchronous>, transform_indices = @transform_5, window_bounds = array<i64: 768, 128>}, {pipeline_mode = #tpu.pipeline_mode<synchronous>, transform_indices = @transform_6, window_bounds = array<i64: 1, 128>}, {pipeline_mode = #tpu.pipeline_mode<synchronous>, transform_indices = @transform_7, window_bounds = array<i64: 768, 128>}, {pipeline_mode = #tpu.pipeline_mode<synchronous>, transform_indices = @transform_8, window_bounds = array<i64: 1, 128>}, {transform_indices = @transform_9, window_bounds = array<i64: 1, 1, 128>}, {transform_indices = @transform_10, window_bounds = array<i64: 1, 1, 128>}, {transform_indices = @transform_11, window_bounds = array<i64: 1, 128, 128>}, {transform_indices = @transform_12, window_bounds = array<i64: 1, 128, 128>}]} {
    %c0 = arith.constant 0 : index
    %c0_0 = arith.constant 0 : index
    %c0_1 = arith.constant 0 : index
    %0 = vector.load %arg3[%c0, %c0_0, %c0_1] : memref<1x128x768xf32, #tpu.memory_space<vmem>>, vector<1x128x768xf32>
    %1 = vector.shape_cast %0 : vector<1x128x768xf32> to vector<128x768xf32>
    %c0_2 = arith.constant 0 : index
    %c0_3 = arith.constant 0 : index
    %c0_4 = arith.constant 0 : index
    %2 = vector.load %arg4[%c0_2, %c0_3, %c0_4] : memref<1x128x768xf32, #tpu.memory_space<vmem>>, vector<1x128x768xf32>
    %3 = vector.shape_cast %2 : vector<1x128x768xf32> to vector<128x768xf32>
    %c0_5 = arith.constant 0 : index
    %c0_6 = arith.constant 0 : index
    %4 = vector.load %arg7[%c0_5, %c0_6] : memref<768x128xf32, #tpu.memory_space<vmem>>, vector<768x128xf32>
    %cst = arith.constant dense<0.000000e+00> : vector<128x128xf32>
    %5 = tpu.matmul %1, %4, %cst {dimension_numbers = #tpu.dot_dimension_numbers<[1], [0], [0], [1], [0, 0, 1, 1], [], []>} : vector<128x768xf32>, vector<768x128xf32>, vector<128x128xf32> -> vector<128x128xf32>
    %c0_7 = arith.constant 0 : index
    %c0_8 = arith.constant 0 : index
    %6 = vector.load %arg8[%c0_7, %c0_8] : memref<1x128xf32, #tpu.memory_space<vmem>>, vector<1x128xf32>
    %7 = vector.broadcast %6 : vector<1x128xf32> to vector<128x128xf32>
    %8 = arith.addf %5, %7 : vector<128x128xf32>
    %c0_9 = arith.constant 0 : index
    %c0_10 = arith.constant 0 : index
    %9 = vector.load %arg9[%c0_9, %c0_10] : memref<768x128xf32, #tpu.memory_space<vmem>>, vector<768x128xf32>
    %cst_11 = arith.constant dense<0.000000e+00> : vector<128x128xf32>
    %10 = tpu.matmul %3, %9, %cst_11 {dimension_numbers = #tpu.dot_dimension_numbers<[1], [0], [0], [1], [0, 0, 1, 1], [], []>} : vector<128x768xf32>, vector<768x128xf32>, vector<128x128xf32> -> vector<128x128xf32>
    %c0_12 = arith.constant 0 : index
    %c0_13 = arith.constant 0 : index
    %11 = vector.load %arg10[%c0_12, %c0_13] : memref<1x128xf32, #tpu.memory_space<vmem>>, vector<1x128xf32>
    %12 = vector.broadcast %11 : vector<1x128xf32> to vector<128x128xf32>
    %13 = arith.addf %10, %12 : vector<128x128xf32>
    %14 = tpu.transpose %8, [1, 0] : vector<128x128xf32> -> vector<128x128xf32>
    %15 = tpu.transpose %13, [1, 0] : vector<128x128xf32> -> vector<128x128xf32>
    %c0_14 = arith.constant 0 : index
    %c0_15 = arith.constant 0 : index
    %c0_16 = arith.constant 0 : index
    %16 = vector.load %arg11[%c0_14, %c0_15, %c0_16] : memref<1x1x128xf32, #tpu.memory_space<vmem>>, vector<1x1x128xf32>
    %17 = vector.shape_cast %16 : vector<1x1x128xf32> to vector<1x128xf32>
    %18 = vector.broadcast %17 : vector<1x128xf32> to vector<128x128xf32>
    %19 = arith.addf %14, %18 : vector<128x128xf32>
    %20 = vector.broadcast %17 : vector<1x128xf32> to vector<128x128xf32>
    %21 = arith.addf %15, %20 : vector<128x128xf32>
    %c0_17 = arith.constant 0 : index
    %c0_18 = arith.constant 0 : index
    %c0_19 = arith.constant 0 : index
    %22 = vector.load %arg13[%c0_17, %c0_18, %c0_19] : memref<1x128x128xf32, #tpu.memory_space<vmem>>, vector<1x128x128xf32>
    %23 = vector.shape_cast %22 : vector<1x128x128xf32> to vector<128x128xf32>
    %24 = vector.shape_cast %19 : vector<128x128xf32> to vector<1x128x128xf32>
    tpu.vector_store %arg13[%c0_17, %c0_18, %c0_19], %24 {strides = array<i32>} : memref<1x128x128xf32, #tpu.memory_space<vmem>>, vector<1x128x128xf32>,
    %c0_20 = arith.constant 0 : index
    %c0_21 = arith.constant 0 : index
    %c0_22 = arith.constant 0 : index
    %25 = vector.load %arg14[%c0_20, %c0_21, %c0_22] : memref<1x128x128xf32, #tpu.memory_space<vmem>>, vector<1x128x128xf32>
    %26 = vector.shape_cast %25 : vector<1x128x128xf32> to vector<128x128xf32>
    %27 = vector.shape_cast %21 : vector<128x128xf32> to vector<1x128x128xf32>
    tpu.vector_store %arg14[%c0_20, %c0_21, %c0_22], %27 {strides = array<i32>} : memref<1x128x128xf32, #tpu.memory_space<vmem>>, vector<1x128x128xf32>,
    %c0_i32 = arith.constant 0 : i32
    %28 = arith.cmpi eq, %arg1, %c0_i32 : i32
    %29 = arith.extui %28 : i1 to i32
    %c0_i32_23 = arith.constant 0 : i32
    %30 = arith.cmpi ne, %29, %c0_i32_23 : i32
    scf.if %30 {
      %c0_24 = arith.constant 0 : index
      %c0_25 = arith.constant 0 : index
      %c0_26 = arith.constant 0 : index
      %31 = vector.load %arg2[%c0_24, %c0_25, %c0_26] : memref<1x1x768xf32, #tpu.memory_space<vmem>>, vector<1x1x768xf32>
      %32 = vector.shape_cast %31 : vector<1x1x768xf32> to vector<1x768xf32>
      %c0_27 = arith.constant 0 : index
      %c0_28 = arith.constant 0 : index
      %33 = vector.load %arg5[%c0_27, %c0_28] : memref<768x128xf32, #tpu.memory_space<vmem>>, vector<768x128xf32>
      %cst_29 = arith.constant dense<0.000000e+00> : vector<1x128xf32>
      %34 = tpu.matmul %32, %33, %cst_29 {dimension_numbers = #tpu.dot_dimension_numbers<[1], [0], [0], [1], [0, 0, 1, 1], [], []>} : vector<1x768xf32>, vector<768x128xf32>, vector<1x128xf32> -> vector<1x128xf32>
      %c0_30 = arith.constant 0 : index
      %c0_31 = arith.constant 0 : index
      %35 = vector.load %arg6[%c0_30, %c0_31] : memref<1x128xf32, #tpu.memory_space<vmem>>, vector<1x128xf32>
      %36 = arith.addf %34, %35 : vector<1x128xf32>
      %c0_32 = arith.constant 0 : index
      %c0_33 = arith.constant 0 : index
      %c0_34 = arith.constant 0 : index
      %37 = vector.load %arg12[%c0_32, %c0_33, %c0_34] : memref<1x1x128xf32, #tpu.memory_space<vmem>>, vector<1x1x128xf32>
      %38 = vector.shape_cast %37 : vector<1x1x128xf32> to vector<1x128xf32>
      %39 = vector.shape_cast %36 : vector<1x128xf32> to vector<1x1x128xf32>
      tpu.vector_store %arg12[%c0_32, %c0_33, %c0_34], %39 {strides = array<i32>} : memref<1x1x128xf32, #tpu.memory_space<vmem>>, vector<1x1x128xf32>,
    } else {
    }
    return
  }
  func.func @transform_0(%arg0: i32, %arg1: i32) -> (i32, i32, i32) {
    %c0_i32 = arith.constant 0 : i32
    %c0_i32_0 = arith.constant 0 : i32
    %c0_i32_1 = arith.constant 0 : i32
    return %arg0, %c0_i32, %c0_i32_0 : i32, i32, i32
  }
  func.func @transform_1(%arg0: i32, %arg1: i32) -> (i32, i32, i32) {
    %c0_i32 = arith.constant 0 : i32
    %c0_i32_0 = arith.constant 0 : i32
    return %arg0, %arg1, %c0_i32 : i32, i32, i32
  }
  func.func @transform_2(%arg0: i32, %arg1: i32) -> (i32, i32, i32) {
    %c0_i32 = arith.constant 0 : i32
    %c0_i32_0 = arith.constant 0 : i32
    return %arg0, %arg1, %c0_i32 : i32, i32, i32
  }
  func.func @transform_3(%arg0: i32, %arg1: i32) -> (i32, i32) {
    %c0_i32 = arith.constant 0 : i32
    %c0_i32_0 = arith.constant 0 : i32
    %c0_i32_1 = arith.constant 0 : i32
    return %c0_i32, %c0_i32_0 : i32, i32
  }
  func.func @transform_4(%arg0: i32, %arg1: i32) -> (i32, i32) {
    %c0_i32 = arith.constant 0 : i32
    %c0_i32_0 = arith.constant 0 : i32
    %c0_i32_1 = arith.constant 0 : i32
    return %c0_i32, %c0_i32_0 : i32, i32
  }
  func.func @transform_5(%arg0: i32, %arg1: i32) -> (i32, i32) {
    %c0_i32 = arith.constant 0 : i32
    %c0_i32_0 = arith.constant 0 : i32
    %c0_i32_1 = arith.constant 0 : i32
    return %c0_i32, %c0_i32_0 : i32, i32
  }
  func.func @transform_6(%arg0: i32, %arg1: i32) -> (i32, i32) {
    %c0_i32 = arith.constant 0 : i32
    %c0_i32_0 = arith.constant 0 : i32
    %c0_i32_1 = arith.constant 0 : i32
    return %c0_i32, %c0_i32_0 : i32, i32
  }
  func.func @transform_7(%arg0: i32, %arg1: i32) -> (i32, i32) {
    %c0_i32 = arith.constant 0 : i32
    %c0_i32_0 = arith.constant 0 : i32
    %c0_i32_1 = arith.constant 0 : i32
    return %c0_i32, %c0_i32_0 : i32, i32
  }
  func.func @transform_8(%arg0: i32, %arg1: i32) -> (i32, i32) {
    %c0_i32 = arith.constant 0 : i32
    %c0_i32_0 = arith.constant 0 : i32
    %c0_i32_1 = arith.constant 0 : i32
    return %c0_i32, %c0_i32_0 : i32, i32
  }
  func.func @transform_9(%arg0: i32, %arg1: i32) -> (i32, i32, i32) {
    %c0_i32 = arith.constant 0 : i32
    %c0_i32_0 = arith.constant 0 : i32
    return %arg0, %c0_i32, %arg1 : i32, i32, i32
  }
  func.func @transform_10(%arg0: i32, %arg1: i32) -> (i32, i32, i32) {
    %c0_i32 = arith.constant 0 : i32
    %c0_i32_0 = arith.constant 0 : i32
    %c0_i32_1 = arith.constant 0 : i32
    return %arg0, %c0_i32, %c0_i32_0 : i32, i32, i32
  }
  func.func @transform_11(%arg0: i32, %arg1: i32) -> (i32, i32, i32) {
    %c0_i32 = arith.constant 0 : i32
    %c0_i32_0 = arith.constant 0 : i32
    return %arg0, %c0_i32, %arg1 : i32, i32, i32
  }
  func.func @transform_12(%arg0: i32, %arg1: i32) -> (i32, i32, i32) {
    %c0_i32 = arith.constant 0 : i32
    %c0_i32_0 = arith.constant 0 : i32
    return %arg0, %c0_i32, %arg1 : i32, i32, i32
  }
}

</mosaic_0001>

<llo_original>
// kernel: tpu_custom_call.1
$region0: #{tpu_custom_call.1}
  #allocation0 [shape = 'u32[]', space=smem, size = 0x4, offset = 0x4, fixed_abs, tag = 'smem constant byte address 0x4 - core index']
  #allocation1 [shape = 'u32[144,128]{1,0:T(1,128)}', space=vmem, size = 0x12000, scoped, tag = 'internal scratch']
  %s0 = inlined_call_operand.hbm [shape: f32[2,1,768], index: 0, kind: input, shape index: {}]
  %s1 = inlined_call_operand.hbm [shape: f32[2,128,768], index: 1, kind: input, shape index: {}]
  %s2 = inlined_call_operand.hbm [shape: f32[2,128,768], index: 2, kind: input, shape index: {}]
  %s3 = inlined_call_operand.hbm [shape: f32[768,128], index: 3, kind: input, shape index: {}]
  %s4 = inlined_call_operand.vmem [shape: f32[1,128], index: 4, kind: input, shape index: {}]
  %s5 = inlined_call_operand.hbm [shape: f32[768,128], index: 5, kind: input, shape index: {}]
  %s6 = inlined_call_operand.vmem [shape: f32[1,128], index: 6, kind: input, shape index: {}]
  %s7 = inlined_call_operand.hbm [shape: f32[768,128], index: 7, kind: input, shape index: {}]
  %s8 = inlined_call_operand.vmem [shape: f32[1,128], index: 8, kind: input, shape index: {}]
  %s9 = inlined_call_operand.vmem [shape: f32[2,1,128], index: 9, kind: input, shape index: {}]
  %s10 = inlined_call_operand.hbm [shape: f32[2,1,128], index: 10, kind: output, shape index: {0}]
  %s11 = inlined_call_operand.hbm [shape: f32[2,128,128], index: 11, kind: output, shape index: {1}]
  %s12 = inlined_call_operand.hbm [shape: f32[2,128,128], index: 12, kind: output, shape index: {2}]
  %13 = xla_tuple %s10, %s11, %s12
  %s14 = sld [smem:[#allocation0]]
  $region117: #{tpu_custom_call.1} parent=0
    _
  %s16 = ssub.s32 1, %s14
  %s17 = scalar_select 0, %s16, %s14
  $region1: #{tpu_custom_call.1} parent=0
    #allocation2 [shape = 'u8[6144]{0}', space=vmem, size = 0x1800, scoped, tag = 'input window, operand 0']
    #allocation3 [shape = 's32[2]{0}', space=sflag, size = 0x8, scoped, tag = 'scoped memory for tpu_custom_call.1']
    #allocation4 [shape = 's32[2]{0}', space=sflag, size = 0x8, scoped, tag = 'scoped memory for tpu_custom_call.1']
    #allocation5 [shape = 'u8[786432]{0}', space=vmem, size = 0xc0000, scoped, tag = 'input window, operand 1']
    #allocation6 [shape = 's32[2]{0}', space=sflag, size = 0x8, scoped, tag = 'scoped memory for tpu_custom_call.1']
    #allocation7 [shape = 'u8[786432]{0}', space=vmem, size = 0xc0000, scoped, tag = 'input window, operand 2']
    #allocation8 [shape = 'u8[393216]{0}', space=vmem, size = 0x60000, scoped, tag = 'input window, operand 3, single buffered']
    #allocation9 [shape = 's32[1]{0}', space=sflag, size = 0x4, scoped, tag = 'scoped memory for tpu_custom_call.1']
    #allocation10 [shape = 'u8[393216]{0}', space=vmem, size = 0x60000, scoped, tag = 'input window, operand 5, single buffered']
    #allocation11 [shape = 'u8[393216]{0}', space=vmem, size = 0x60000, scoped, tag = 'input window, operand 7, single buffered']
    #allocation12 [shape = 's32[1]{0}', space=sflag, size = 0x4, scoped, tag = 'scoped memory for tpu_custom_call.1']
    #allocation13 [shape = 'u8[1024]{0}', space=vmem, size = 0x400, scoped, tag = 'output window, operand 0']
    #allocation14 [shape = 'u8[131072]{0}', space=vmem, size = 0x20000, scoped, tag = 'output window, operand 1']
    #allocation15 [shape = 's32[2]{0}', space=sflag, size = 0x8, scoped, tag = 'scoped memory for tpu_custom_call.1']
    #allocation16 [shape = 'u8[131072]{0}', space=vmem, size = 0x20000, scoped, tag = 'output window, operand 2']
    %18 = vsyncpa [#allocation3], 0
    %s19 = scalar_lea.sflag [#allocation3], 1
    %20 = vsyncpa %s19, 0
    %21 = vsyncpa [#allocation6], 0
    %s22 = scalar_lea.sflag [#allocation6], 1
    %23 = vsyncpa %s22, 0
    %24 = vsyncpa [#allocation9], 0
    %25 = vsyncpa [#allocation12], 0
    %26 = vsyncpa [#allocation4], 0
    %s27 = scalar_lea.sflag [#allocation4], 1
    %28 = vsyncpa %s27, 0
    %29 = vsyncpa [#allocation15], 0
    %s30 = scalar_lea.sflag [#allocation15], 1
    %31 = vsyncpa %s30, 0
    loop: start=0, step=1, limit=4
    $region2: #{tpu_custom_call.1} parent=1 // loop_pre_header
      _
    $region3: #{tpu_custom_call.1} parent=1 // loop_header
      %s33 = sphi 0, %s37
      %p34 = scmp.ge.s32.totalorder %s33, 4
      %s40 = sphi 0, %s52
      %s41 = sphi 0, %s48
      %s42 = sphi 0, %s40
      %s43 = sphi 0, %s41
      %s44 = sphi 0, %s42
      %s45 = sphi 0, %s43
      %s55 = sphi 0, %s57
      %s58 = sphi 0, %s55
      %s59 = sphi 0, %s58
      %s75 = sphi 0, %s59
      %s83 = sphi 0, %s85
      %s86 = sphi 0, %s83
      %s87 = sphi 0, %s86
      %s103 = sphi 0, %s87
      %s111 = sphi 0, %s113
      %s114 = sphi 0, %s111
      %s115 = sphi 0, %s114
      %s131 = sphi 0, %s115
      %s135 = sphi 0, %s135
      %s137 = sphi 0, %s135
      %s138 = sphi 0, %s137
      %s152 = sphi 0, %s138
      %s156 = sphi 0, %s156
      %s158 = sphi 0, %s156
      %s159 = sphi 0, %s158
      %s173 = sphi 0, %s159
      %s177 = sphi 0, %s177
      %s179 = sphi 0, %s177
      %s180 = sphi 0, %s179
      %s194 = sphi 0, %s180
      %s198 = sphi 0, %s198
      %s200 = sphi 0, %s198
      %s201 = sphi 0, %s200
      %s215 = sphi 0, %s201
      %s219 = sphi 0, %s219
      %s221 = sphi 0, %s219
      %s222 = sphi 0, %s221
      %s236 = sphi 0, %s222
      %s240 = sphi 0, %s240
      %s242 = sphi 0, %s240
      %s243 = sphi 0, %s242
      %s257 = sphi 0, %s243
      %s265 = sphi 0, %s267
      %s268 = sphi 0, %s265
      %s269 = sphi 0, %s268
      %s285 = sphi 0, %s269
      %s291 = sphi 0, %s293
      %s294 = sphi 0, %s291
      %s295 = sphi 0, %s294
      %s311 = sphi 0, %s295
      %s319 = sphi 0, %s321
      %s322 = sphi 0, %s319
      %s323 = sphi 0, %s322
      %s339 = sphi 0, %s323
      %s347 = sphi 0, %s349
      %s350 = sphi 0, %s347
      %s351 = sphi 0, %s350
      %s367 = sphi 0, %s351
    $region4: #{tpu_custom_call.1} parent=1 // loop_header_branch
      %36 = sbr.rel (%p34) target = $region8
    $region5: #{tpu_custom_call.1} parent=1 // loop_body
      %s38 = ssub.s32 %s33, 1
      %s39 = ssub.s32 %s33, 2
      %s46 = sadd.s32 1, %s41
      %p47 = scmp.ge.s32.totalorder %s46, 1
      %s48 = scalar_select %p47, 0, %s46
      %s49 = sadd.s32 1, %s40
      %s50 = scalar_select %p47, %s49, %s40
      %p51 = scmp.ge.s32.totalorder %s50, 2
      %s52 = scalar_select %p51, 0, %s50
      %s53 = ssub.s32 %s40, %s52
      %p54 = scmp.eq.s32.totalorder %s53, 0
      %s56 = sadd.s32 %s55, 1
      %s57 = scalar_select %p54, %s55, %s56
      %p60 = pneg %p54
      %p61 = scmp.eq.s32.totalorder %s33, 1
      %p62 = por %p60, %p61
      %p63 = scmp.ne.s32.totalorder %s55, %s58
      %p64 = scmp.eq.s32.totalorder %s33, 0
      %p65 = por %p63, %p64
      %p66 = scmp.ne.s32.totalorder %s55, %s58
      %p67 = scmp.eq.s32.totalorder %s38, 1
      %p68 = por %p66, %p67
      %p69 = scmp.ne.s32.totalorder %s58, %s59
      %p70 = scmp.eq.s32.totalorder %s38, 0
      %p71 = por %p69, %p70
      %p72 = scmp.ne.s32.totalorder %s58, %s59
      %p73 = scmp.eq.s32.totalorder %s39, 1
      %p74 = por %p72, %p73
      %p76 = scmp.ne.s32.totalorder %s59, %s75
      %p77 = scmp.eq.s32.totalorder %s39, 0
      %p78 = por %p76, %p77
      %s79 = ssub.s32 %s40, %s52
      %s80 = ssub.s32 %s41, %s48
      %s81 = sor.u32 %s79, %s80
      %p82 = scmp.eq.s32.totalorder %s81, 0
      %s84 = sadd.s32 %s83, 1
      %s85 = scalar_select %p82, %s83, %s84
      %p88 = pneg %p82
      %p89 = scmp.eq.s32.totalorder %s33, 1
      %p90 = por %p88, %p89
      %p91 = scmp.ne.s32.totalorder %s83, %s86
      %p92 = scmp.eq.s32.totalorder %s33, 0
      %p93 = por %p91, %p92
      %p94 = scmp.ne.s32.totalorder %s83, %s86
      %p95 = scmp.eq.s32.totalorder %s38, 1
      %p96 = por %p94, %p95
      %p97 = scmp.ne.s32.totalorder %s86, %s87
      %p98 = scmp.eq.s32.totalorder %s38, 0
      %p99 = por %p97, %p98
      %p100 = scmp.ne.s32.totalorder %s86, %s87
      %p101 = scmp.eq.s32.totalorder %s39, 1
      %p102 = por %p100, %p101
      %p104 = scmp.ne.s32.totalorder %s87, %s103
      %p105 = scmp.eq.s32.totalorder %s39, 0
      %p106 = por %p104, %p105
      %s107 = ssub.s32 %s40, %s52
      %s108 = ssub.s32 %s41, %s48
      %s109 = sor.u32 %s107, %s108
      %p110 = scmp.eq.s32.totalorder %s109, 0
      %s112 = sadd.s32 %s111, 1
      %s113 = scalar_select %p110, %s111, %s112
      %p116 = pneg %p110
      %p117 = scmp.eq.s32.totalorder %s33, 1
      %p118 = por %p116, %p117
      %p119 = scmp.ne.s32.totalorder %s111, %s114
      %p120 = scmp.eq.s32.totalorder %s33, 0
      %p121 = por %p119, %p120
      %p122 = scmp.ne.s32.totalorder %s111, %s114
      %p123 = scmp.eq.s32.totalorder %s38, 1
      %p124 = por %p122, %p123
      %p125 = scmp.ne.s32.totalorder %s114, %s115
      %p126 = scmp.eq.s32.totalorder %s38, 0
      %p127 = por %p125, %p126
      %p128 = scmp.ne.s32.totalorder %s114, %s115
      %p129 = scmp.eq.s32.totalorder %s39, 1
      %p130 = por %p128, %p129
      %p132 = scmp.ne.s32.totalorder %s115, %s131
      %p133 = scmp.eq.s32.totalorder %s39, 0
      %p134 = por %p132, %p133
      %s136 = sadd.s32 %s135, 1
      %p139 = scmp.eq.s32.totalorder %s33, 1
      %p140 = scmp.ne.s32.totalorder %s135, %s137
      %p141 = scmp.eq.s32.totalorder %s33, 0
      %p142 = por %p140, %p141
      %p143 = scmp.ne.s32.totalorder %s135, %s137
      %p144 = scmp.eq.s32.totalorder %s38, 1
      %p145 = por %p143, %p144
      %p146 = scmp.ne.s32.totalorder %s137, %s138
      %p147 = scmp.eq.s32.totalorder %s38, 0
      %p148 = por %p146, %p147
      %p149 = scmp.ne.s32.totalorder %s137, %s138
      %p150 = scmp.eq.s32.totalorder %s39, 1
      %p151 = por %p149, %p150
      %p153 = scmp.ne.s32.totalorder %s138, %s152
      %p154 = scmp.eq.s32.totalorder %s39, 0
      %p155 = por %p153, %p154
      %s157 = sadd.s32 %s156, 1
      %p160 = scmp.eq.s32.totalorder %s33, 1
      %p161 = scmp.ne.s32.totalorder %s156, %s158
      %p162 = scmp.eq.s32.totalorder %s33, 0
      %p163 = por %p161, %p162
      %p164 = scmp.ne.s32.totalorder %s156, %s158
      %p165 = scmp.eq.s32.totalorder %s38, 1
      %p166 = por %p164, %p165
      %p167 = scmp.ne.s32.totalorder %s158, %s159
      %p168 = scmp.eq.s32.totalorder %s38, 0
      %p169 = por %p167, %p168
      %p170 = scmp.ne.s32.totalorder %s158, %s159
      %p171 = scmp.eq.s32.totalorder %s39, 1
      %p172 = por %p170, %p171
      %p174 = scmp.ne.s32.totalorder %s159, %s173
      %p175 = scmp.eq.s32.totalorder %s39, 0
      %p176 = por %p174, %p175
      %s178 = sadd.s32 %s177, 1
      %p181 = scmp.eq.s32.totalorder %s33, 1
      %p182 = scmp.ne.s32.totalorder %s177, %s179
      %p183 = scmp.eq.s32.totalorder %s33, 0
      %p184 = por %p182, %p183
      %p185 = scmp.ne.s32.totalorder %s177, %s179
      %p186 = scmp.eq.s32.totalorder %s38, 1
      %p187 = por %p185, %p186
      %p188 = scmp.ne.s32.totalorder %s179, %s180
      %p189 = scmp.eq.s32.totalorder %s38, 0
      %p190 = por %p188, %p189
      %p191 = scmp.ne.s32.totalorder %s179, %s180
      %p192 = scmp.eq.s32.totalorder %s39, 1
      %p193 = por %p191, %p192
      %p195 = scmp.ne.s32.totalorder %s180, %s194
      %p196 = scmp.eq.s32.totalorder %s39, 0
      %p197 = por %p195, %p196
      %s199 = sadd.s32 %s198, 1
      %p202 = scmp.eq.s32.totalorder %s33, 1
      %p203 = scmp.ne.s32.totalorder %s198, %s200
      %p204 = scmp.eq.s32.totalorder %s33, 0
      %p205 = por %p203, %p204
      %p206 = scmp.ne.s32.totalorder %s198, %s200
      %p207 = scmp.eq.s32.totalorder %s38, 1
      %p208 = por %p206, %p207
      %p209 = scmp.ne.s32.totalorder %s200, %s201
      %p210 = scmp.eq.s32.totalorder %s38, 0
      %p211 = por %p209, %p210
      %p212 = scmp.ne.s32.totalorder %s200, %s201
      %p213 = scmp.eq.s32.totalorder %s39, 1
      %p214 = por %p212, %p213
      %p216 = scmp.ne.s32.totalorder %s201, %s215
      %p217 = scmp.eq.s32.totalorder %s39, 0
      %p218 = por %p216, %p217
      %s220 = sadd.s32 %s219, 1
      %p223 = scmp.eq.s32.totalorder %s33, 1
      %p224 = scmp.ne.s32.totalorder %s219, %s221
      %p225 = scmp.eq.s32.totalorder %s33, 0
      %p226 = por %p224, %p225
      %p227 = scmp.ne.s32.totalorder %s219, %s221
      %p228 = scmp.eq.s32.totalorder %s38, 1
      %p229 = por %p227, %p228
      %p230 = scmp.ne.s32.totalorder %s221, %s222
      %p231 = scmp.eq.s32.totalorder %s38, 0
      %p232 = por %p230, %p231
      %p233 = scmp.ne.s32.totalorder %s221, %s222
      %p234 = scmp.eq.s32.totalorder %s39, 1
      %p235 = por %p233, %p234
      %p237 = scmp.ne.s32.totalorder %s222, %s236
      %p238 = scmp.eq.s32.totalorder %s39, 0
      %p239 = por %p237, %p238
      %s241 = sadd.s32 %s240, 1
      %p244 = scmp.eq.s32.totalorder %s33, 1
      %p245 = scmp.ne.s32.totalorder %s240, %s242
      %p246 = scmp.eq.s32.totalorder %s33, 0
      %p247 = por %p245, %p246
      %p248 = scmp.ne.s32.totalorder %s240, %s242
      %p249 = scmp.eq.s32.totalorder %s38, 1
      %p250 = por %p248, %p249
      %p251 = scmp.ne.s32.totalorder %s242, %s243
      %p252 = scmp.eq.s32.totalorder %s38, 0
      %p253 = por %p251, %p252
      %p254 = scmp.ne.s32.totalorder %s242, %s243
      %p255 = scmp.eq.s32.totalorder %s39, 1
      %p256 = por %p254, %p255
      %p258 = scmp.ne.s32.totalorder %s243, %s257
      %p259 = scmp.eq.s32.totalorder %s39, 0
      %p260 = por %p258, %p259
      %s261 = ssub.s32 %s40, %s52
      %s262 = ssub.s32 %s41, %s48
      %s263 = sor.u32 %s261, %s262
      %p264 = scmp.eq.s32.totalorder %s263, 0
      %s266 = sadd.s32 %s265, 1
      %s267 = scalar_select %p264, %s265, %s266
      %p270 = pneg %p264
      %p271 = scmp.eq.s32.totalorder %s33, 1
      %p272 = por %p270, %p271
      %p273 = scmp.ne.s32.totalorder %s265, %s268
      %p274 = scmp.eq.s32.totalorder %s33, 0
      %p275 = por %p273, %p274
      %p276 = scmp.ne.s32.totalorder %s265, %s268
      %p277 = scmp.eq.s32.totalorder %s38, 1
      %p278 = por %p276, %p277
      %p279 = scmp.ne.s32.totalorder %s268, %s269
      %p280 = scmp.eq.s32.totalorder %s38, 0
      %p281 = por %p279, %p280
      %p282 = scmp.ne.s32.totalorder %s268, %s269
      %p283 = scmp.eq.s32.totalorder %s39, 1
      %p284 = por %p282, %p283
      %p286 = scmp.ne.s32.totalorder %s269, %s285
      %p287 = scmp.eq.s32.totalorder %s39, 0
      %p288 = por %p286, %p287
      %s289 = ssub.s32 %s40, %s52
      %p290 = scmp.eq.s32.totalorder %s289, 0
      %s292 = sadd.s32 %s291, 1
      %s293 = scalar_select %p290, %s291, %s292
      %p296 = pneg %p290
      %p297 = scmp.eq.s32.totalorder %s33, 1
      %p298 = por %p296, %p297
      %p299 = scmp.ne.s32.totalorder %s291, %s294
      %p300 = scmp.eq.s32.totalorder %s33, 0
      %p301 = por %p299, %p300
      %p302 = scmp.ne.s32.totalorder %s291, %s294
      %p303 = scmp.eq.s32.totalorder %s38, 1
      %p304 = por %p302, %p303
      %p305 = scmp.ne.s32.totalorder %s294, %s295
      %p306 = scmp.eq.s32.totalorder %s38, 0
      %p307 = por %p305, %p306
      %p308 = scmp.ne.s32.totalorder %s294, %s295
      %p309 = scmp.eq.s32.totalorder %s39, 1
      %p310 = por %p308, %p309
      %p312 = scmp.ne.s32.totalorder %s295, %s311
      %p313 = scmp.eq.s32.totalorder %s39, 0
      %p314 = por %p312, %p313
      %s315 = ssub.s32 %s40, %s52
      %s316 = ssub.s32 %s41, %s48
      %s317 = sor.u32 %s315, %s316
      %p318 = scmp.eq.s32.totalorder %s317, 0
      %s320 = sadd.s32 %s319, 1
      %s321 = scalar_select %p318, %s319, %s320
      %p324 = pneg %p318
      %p325 = scmp.eq.s32.totalorder %s33, 1
      %p326 = por %p324, %p325
      %p327 = scmp.ne.s32.totalorder %s319, %s322
      %p328 = scmp.eq.s32.totalorder %s33, 0
      %p329 = por %p327, %p328
      %p330 = scmp.ne.s32.totalorder %s319, %s322
      %p331 = scmp.eq.s32.totalorder %s38, 1
      %p332 = por %p330, %p331
      %p333 = scmp.ne.s32.totalorder %s322, %s323
      %p334 = scmp.eq.s32.totalorder %s38, 0
      %p335 = por %p333, %p334
      %p336 = scmp.ne.s32.totalorder %s322, %s323
      %p337 = scmp.eq.s32.totalorder %s39, 1
      %p338 = por %p336, %p337
      %p340 = scmp.ne.s32.totalorder %s323, %s339
      %p341 = scmp.eq.s32.totalorder %s39, 0
      %p342 = por %p340, %p341
      %s343 = ssub.s32 %s40, %s52
      %s344 = ssub.s32 %s41, %s48
      %s345 = sor.u32 %s343, %s344
      %p346 = scmp.eq.s32.totalorder %s345, 0
      %s348 = sadd.s32 %s347, 1
      %s349 = scalar_select %p346, %s347, %s348
      %p352 = pneg %p346
      %p353 = scmp.eq.s32.totalorder %s33, 1
      %p354 = por %p352, %p353
      %p355 = scmp.ne.s32.totalorder %s347, %s350
      %p356 = scmp.eq.s32.totalorder %s33, 0
      %p357 = por %p355, %p356
      %p358 = scmp.ne.s32.totalorder %s347, %s350
      %p359 = scmp.eq.s32.totalorder %s38, 1
      %p360 = por %p358, %p359
      %p361 = scmp.ne.s32.totalorder %s350, %s351
      %p362 = scmp.eq.s32.totalorder %s38, 0
      %p363 = por %p361, %p362
      %p364 = scmp.ne.s32.totalorder %s350, %s351
      %p365 = scmp.eq.s32.totalorder %s39, 1
      %p366 = por %p364, %p365
      %p368 = scmp.ne.s32.totalorder %s351, %s367
      %p369 = scmp.eq.s32.totalorder %s39, 0
      %p370 = por %p368, %p369
      %p371 = scmp.le.s32.totalorder 1, %s33
      %p372 = scmp.lt.s32.totalorder %s33, 3
      %p373 = pnand %p371, %p372
      %p374 = pneg %p373
      // Predicated region
      $region9: #{tpu_custom_call.1} parent=5 // pred_check
        _
      $region10: #{tpu_custom_call.1} parent=5 // pred_check_branch
        %376 = sbr.rel (%p373) target = $region12
      $region11: #{tpu_custom_call.1} parent=5 // pred_region
        %s377 = ssub.s32 %s33, 1
        // Predicated region
        $region13: #{tpu_custom_call.1} parent=11 // pred_check
          %p378 = pneg %p148
        $region14: #{tpu_custom_call.1} parent=11 // pred_check_branch
          %380 = sbr.rel (%p378) target = $region16
        $region15: #{tpu_custom_call.1} parent=11 // pred_region
          %s382 = ssub.s32 12288, 12288
          %383 = vsyncadd [#allocation9], %s382
          %s384 = sshll.u32 [#allocation8], 4
          %s385 = int_to_ptr.vmem [resolvable:$true] %s384
          %390 = dma.hbm_to_vmem [thread:$0]  %s3, 12288, %s385, [#allocation9], 128, 128, 8
        $region16: #{tpu_custom_call.1} parent=11 // pred_fallthru
          _
        // Predicated region
        $region17: #{tpu_custom_call.1} parent=11 // pred_check
          %p391 = pneg %p169
        $region18: #{tpu_custom_call.1} parent=11 // pred_check_branch
          %393 = sbr.rel (%p391) target = $region20
        $region19: #{tpu_custom_call.1} parent=11 // pred_region
          _
        $region20: #{tpu_custom_call.1} parent=11 // pred_fallthru
          _
        // Predicated region
        $region21: #{tpu_custom_call.1} parent=11 // pred_check
          %p394 = pneg %p190
        $region22: #{tpu_custom_call.1} parent=11 // pred_check_branch
          %396 = sbr.rel (%p394) target = $region24
        $region23: #{tpu_custom_call.1} parent=11 // pred_region
          %s398 = ssub.s32 12288, 12288
          %399 = vsyncadd [#allocation9], %s398
          %s400 = sshll.u32 [#allocation10], 4
          %s401 = int_to_ptr.vmem [resolvable:$true] %s400
          %406 = dma.hbm_to_vmem [thread:$0]  %s5, 12288, %s401, [#allocation9], 128, 128, 8
        $region24: #{tpu_custom_call.1} parent=11 // pred_fallthru
          _
        // Predicated region
        $region25: #{tpu_custom_call.1} parent=11 // pred_check
          %p407 = pneg %p211
        $region26: #{tpu_custom_call.1} parent=11 // pred_check_branch
          %409 = sbr.rel (%p407) target = $region28
        $region27: #{tpu_custom_call.1} parent=11 // pred_region
          _
        $region28: #{tpu_custom_call.1} parent=11 // pred_fallthru
          _
        // Predicated region
        $region29: #{tpu_custom_call.1} parent=11 // pred_check
          %p410 = pneg %p232
        $region30: #{tpu_custom_call.1} parent=11 // pred_check_branch
          %412 = sbr.rel (%p410) target = $region32
        $region31: #{tpu_custom_call.1} parent=11 // pred_region
          %s414 = ssub.s32 12288, 12288
          %415 = vsyncadd [#allocation12], %s414
          %s416 = sshll.u32 [#allocation11], 4
          %s417 = int_to_ptr.vmem [resolvable:$true] %s416
          %422 = dma.hbm_to_vmem [thread:$0]  %s7, 12288, %s417, [#allocation12], 128, 128, 8
        $region32: #{tpu_custom_call.1} parent=11 // pred_fallthru
          _
        // Predicated region
        $region33: #{tpu_custom_call.1} parent=11 // pred_check
          %p423 = pneg %p253
        $region34: #{tpu_custom_call.1} parent=11 // pred_check_branch
          %425 = sbr.rel (%p423) target = $region36
        $region35: #{tpu_custom_call.1} parent=11 // pred_region
          _
        $region36: #{tpu_custom_call.1} parent=11 // pred_fallthru
          _
      $region12: #{tpu_custom_call.1} parent=5 // pred_fallthru
        _
      %p426 = scmp.lt.s32.totalorder %s33, 2
      // Predicated region
      $region37: #{tpu_custom_call.1} parent=5 // pred_check
        %p427 = pneg %p426
      $region38: #{tpu_custom_call.1} parent=5 // pred_check_branch
        %429 = sbr.rel (%p427) target = $region40
      $region39: #{tpu_custom_call.1} parent=5 // pred_region
        // Predicated region
        $region41: #{tpu_custom_call.1} parent=39 // pred_check
          %p430 = pneg %p65
        $region42: #{tpu_custom_call.1} parent=39 // pred_check_branch
          %432 = sbr.rel (%p430) target = $region44
        $region43: #{tpu_custom_call.1} parent=39 // pred_region
          %s433 = sand.u32 %s55, 1
          %s434 = scalar_lea.sflag [#allocation3], %s433
          %s435 = sand.u32 %s55, 1
          %s436 = smul.addr %s435, 6
          %s437 = scalar_lea.vmem [#allocation2], %s436
          %s439 = ssub.s32 96, 96
          %440 = vsyncadd %s434, %s439
          %s441 = smul.addr %s40, 6
          %s442 = smul.addr %s441, 16
          %s443 = scalar_lea.hbm %s0, %s442
          %s445 = sshll.u32 %s437, 4
          %s446 = int_to_ptr.vmem [resolvable:$true] %s445
          %448 = dma.hbm_to_vmem [thread:$0]  %s443, 96, %s446, %s434
        $region44: #{tpu_custom_call.1} parent=39 // pred_fallthru
          _
        // Predicated region
        $region45: #{tpu_custom_call.1} parent=39 // pred_check
          %p449 = pneg %p93
        $region46: #{tpu_custom_call.1} parent=39 // pred_check_branch
          %451 = sbr.rel (%p449) target = $region48
        $region47: #{tpu_custom_call.1} parent=39 // pred_region
          %s452 = sand.u32 %s33, 1
          %s453 = scalar_lea.sflag [#allocation6], %s452
          %s454 = sand.u32 %s83, 1
          %s455 = smul.addr %s454, 768
          %s456 = scalar_lea.vmem [#allocation5], %s455
          %s457 = smul.u32 16, %s41
          %s459 = ssub.s32 12288, 12288
          %460 = vsyncadd %s453, %s459
          %s461 = smul.addr %s457, 6
          %s462 = smul.addr %s40, 96
          %s463 = sadd.s32 %s461, %s462
          %s464 = smul.addr %s463, 128
          %s465 = scalar_lea.hbm %s1, %s464
          %s466 = sshll.u32 %s456, 4
          %s467 = int_to_ptr.vmem [resolvable:$true] %s466
          %472 = dma.hbm_to_vmem [thread:$0]  %s465, 12288, %s467, %s453, 768, 768, 48
        $region48: #{tpu_custom_call.1} parent=39 // pred_fallthru
          _
        // Predicated region
        $region49: #{tpu_custom_call.1} parent=39 // pred_check
          %p473 = pneg %p121
        $region50: #{tpu_custom_call.1} parent=39 // pred_check_branch
          %475 = sbr.rel (%p473) target = $region52
        $region51: #{tpu_custom_call.1} parent=39 // pred_region
          %s476 = sand.u32 %s33, 1
          %s477 = scalar_lea.sflag [#allocation6], %s476
          %s478 = sand.u32 %s111, 1
          %s479 = smul.addr %s478, 768
          %s480 = scalar_lea.vmem [#allocation7], %s479
          %s481 = smul.u32 16, %s41
          %s483 = ssub.s32 12288, 12288
          %484 = vsyncadd %s477, %s483
          %s485 = smul.addr %s481, 6
          %s486 = smul.addr %s40, 96
          %s487 = sadd.s32 %s485, %s486
          %s488 = smul.addr %s487, 128
          %s489 = scalar_lea.hbm %s2, %s488
          %s490 = sshll.u32 %s480, 4
          %s491 = int_to_ptr.vmem [resolvable:$true] %s490
          %496 = dma.hbm_to_vmem [thread:$0]  %s489, 12288, %s491, %s477, 768, 768, 48
        $region52: #{tpu_custom_call.1} parent=39 // pred_fallthru
          _
        // Predicated region
        $region53: #{tpu_custom_call.1} parent=39 // pred_check
          %p497 = pneg %p275
        $region54: #{tpu_custom_call.1} parent=39 // pred_check_branch
          %499 = sbr.rel (%p497) target = $region56
        $region55: #{tpu_custom_call.1} parent=39 // pred_region
          %p500 = scmp.lt.s32.totalorder %s40, 1
          %s501 = scalar_select %p500, %s40, 1
          %p502 = scmp.lt.s32.totalorder %s41, 0
          %s503 = scalar_select %p502, %s41, 0
          %s504 = sadd.s32 %s503, %s501
          %s505 = scalar_lea.vmem %s9, %s504
        $region56: #{tpu_custom_call.1} parent=39 // pred_fallthru
          _
      $region40: #{tpu_custom_call.1} parent=5 // pred_fallthru
        _
      %p506 = scmp.le.s32.totalorder 1, %s33
      %p507 = scmp.lt.s32.totalorder %s33, 3
      %p508 = pnand %p506, %p507
      %p509 = pneg %p508
      // Predicated region
      $region57: #{tpu_custom_call.1} parent=5 // pred_check
        _
      $region58: #{tpu_custom_call.1} parent=5 // pred_check_branch
        %511 = sbr.rel (%p508) target = $region60
      $region59: #{tpu_custom_call.1} parent=5 // pred_region
        %s512 = ssub.s32 %s33, 1
        %s513 = sand.u32 %s58, 1
        %s514 = scalar_lea.sflag [#allocation3], %s513
        %s515 = sand.u32 %s58, 1
        %s516 = smul.addr %s515, 6
        %s517 = scalar_lea.vmem [#allocation2], %s516
        // Predicated region
        $region61: #{tpu_custom_call.1} parent=59 // pred_check
          %p518 = pneg %p71
        $region62: #{tpu_custom_call.1} parent=59 // pred_check_branch
          %520 = sbr.rel (%p518) target = $region64
        $region63: #{tpu_custom_call.1} parent=59 // pred_region
          %521 = dma.done %s514, 96
        $region64: #{tpu_custom_call.1} parent=59 // pred_fallthru
          _
        %s522 = sand.u32 %s38, 1
        %s523 = scalar_lea.sflag [#allocation6], %s522
        %s524 = sand.u32 %s86, 1
        %s525 = smul.addr %s524, 768
        %s526 = scalar_lea.vmem [#allocation5], %s525
        // Predicated region
        $region65: #{tpu_custom_call.1} parent=59 // pred_check
          %p527 = pneg %p99
        $region66: #{tpu_custom_call.1} parent=59 // pred_check_branch
          %529 = sbr.rel (%p527) target = $region68
        $region67: #{tpu_custom_call.1} parent=59 // pred_region
          %530 = dma.done %s523, 12288
        $region68: #{tpu_custom_call.1} parent=59 // pred_fallthru
          _
        %s531 = sand.u32 %s38, 1
        %s532 = scalar_lea.sflag [#allocation6], %s531
        %s533 = sand.u32 %s114, 1
        %s534 = smul.addr %s533, 768
        %s535 = scalar_lea.vmem [#allocation7], %s534
        // Predicated region
        $region69: #{tpu_custom_call.1} parent=59 // pred_check
          %p536 = pneg %p127
        $region70: #{tpu_custom_call.1} parent=59 // pred_check_branch
          %538 = sbr.rel (%p536) target = $region72
        $region71: #{tpu_custom_call.1} parent=59 // pred_region
          %539 = dma.done %s532, 12288
        $region72: #{tpu_custom_call.1} parent=59 // pred_fallthru
          _
        // Predicated region
        $region73: #{tpu_custom_call.1} parent=59 // pred_check
          %p540 = pneg %p148
        $region74: #{tpu_custom_call.1} parent=59 // pred_check_branch
          %542 = sbr.rel (%p540) target = $region76
        $region75: #{tpu_custom_call.1} parent=59 // pred_region
          %543 = dma.done [#allocation9], 12288
        $region76: #{tpu_custom_call.1} parent=59 // pred_fallthru
          _
        // Predicated region
        $region77: #{tpu_custom_call.1} parent=59 // pred_check
          %p544 = pneg %p190
        $region78: #{tpu_custom_call.1} parent=59 // pred_check_branch
          %546 = sbr.rel (%p544) target = $region80
        $region79: #{tpu_custom_call.1} parent=59 // pred_region
          %547 = dma.done [#allocation9], 12288
        $region80: #{tpu_custom_call.1} parent=59 // pred_fallthru
          _
        // Predicated region
        $region81: #{tpu_custom_call.1} parent=59 // pred_check
          %p548 = pneg %p232
        $region82: #{tpu_custom_call.1} parent=59 // pred_check_branch
          %550 = sbr.rel (%p548) target = $region84
        $region83: #{tpu_custom_call.1} parent=59 // pred_region
          %551 = dma.done [#allocation12], 12288
        $region84: #{tpu_custom_call.1} parent=59 // pred_fallthru
          _
        %s552 = sand.u32 %s58, 1
        %s553 = scalar_lea.sflag [#allocation3], %s552
        %s554 = sand.u32 %s58, 1
        %s555 = smul.addr %s554, 6
        %s556 = scalar_lea.vmem [#allocation2], %s555
        %p557 = pneg %p71
        %p558 = pneg %p68
        %s559 = sand.u32 %s38, 1
        %s560 = scalar_lea.sflag [#allocation6], %s559
        %s561 = sand.u32 %s86, 1
        %s562 = smul.addr %s561, 768
        %s563 = scalar_lea.vmem [#allocation5], %s562
        %p564 = pneg %p99
        %p565 = pneg %p96
        %s566 = sand.u32 %s38, 1
        %s567 = scalar_lea.sflag [#allocation6], %s566
        %s568 = sand.u32 %s114, 1
        %s569 = smul.addr %s568, 768
        %s570 = scalar_lea.vmem [#allocation7], %s569
        %p571 = pneg %p127
        %p572 = pneg %p124
        %p573 = pneg %p148
        %p574 = pneg %p145
        %p575 = pneg %p169
        %p576 = pneg %p166
        %p577 = pneg %p190
        %p578 = pneg %p187
        %p579 = pneg %p211
        %p580 = pneg %p208
        %p581 = pneg %p232
        %p582 = pneg %p229
        %p583 = pneg %p253
        %p584 = pneg %p250
        %p585 = scmp.lt.s32.totalorder %s42, 1
        %s586 = scalar_select %p585, %s42, 1
        %p587 = scmp.lt.s32.totalorder %s43, 0
        %s588 = scalar_select %p587, %s43, 0
        %s589 = sadd.s32 %s588, %s586
        %s590 = scalar_lea.vmem %s9, %s589
        %p591 = pneg %p281
        %p592 = pneg %p278
        %p593 = pneg %p307
        %p594 = pneg %p304
        %s595 = sand.u32 %s294, 1
        %s596 = scalar_lea.sflag [#allocation4], %s595
        %s597 = sand.u32 %s294, 1
        %s598 = scalar_lea.vmem [#allocation13], %s597
        %p599 = pneg %p335
        %p600 = pneg %p332
        %s601 = sand.u32 %s38, 1
        %s602 = scalar_lea.sflag [#allocation15], %s601
        %s603 = sand.u32 %s322, 1
        %s604 = smul.addr %s603, 128
        %s605 = scalar_lea.vmem [#allocation14], %s604
        %p606 = pneg %p363
        %p607 = pneg %p360
        %s608 = sand.u32 %s38, 1
        %s609 = scalar_lea.sflag [#allocation15], %s608
        %s610 = sand.u32 %s350, 1
        %s611 = smul.addr %s610, 128
        %s612 = scalar_lea.vmem [#allocation16], %s611
        %s613 = smul.u32 16, %s43
        %s614 = smul.u32 16, %s43
        %p615 = scmp.lt.s32.totalorder %s42, 1
        %s616 = scalar_select %p615, %s42, 1
        %p617 = scmp.lt.s32.totalorder %s43, 0
        %s618 = scalar_select %p617, %s43, 0
        %s619 = sadd.s32 %s618, %s616
        %s620 = scalar_lea.vmem %s9, %s619
        %v621 = vld [vmem:[%s526] sm:$0xff]
        %v622 = vld [vmem:[%s526 + $0x8] sm:$0xff]
        %v623 = vld [vmem:[%s526 + $0x10] sm:$0xff]
        %v624 = vld [vmem:[%s526 + $0x18] sm:$0xff]
        %v625 = vld [vmem:[%s526 + $0x20] sm:$0xff]
        %v626 = vld [vmem:[%s526 + $0x28] sm:$0xff]
        %v627 = vld [vmem:[%s526 + $0x30] sm:$0xff]
        %v628 = vld [vmem:[%s526 + $0x38] sm:$0xff]
        %v629 = vld [vmem:[%s526 + $0x40] sm:$0xff]
        %v630 = vld [vmem:[%s526 + $0x48] sm:$0xff]
        %v631 = vld [vmem:[%s526 + $0x50] sm:$0xff]
        %v632 = vld [vmem:[%s526 + $0x58] sm:$0xff]
        %v633 = vld [vmem:[%s526 + $0x60] sm:$0xff]
        %v634 = vld [vmem:[%s526 + $0x68] sm:$0xff]
        %v635 = vld [vmem:[%s526 + $0x70] sm:$0xff]
        %v636 = vld [vmem:[%s526 + $0x78] sm:$0xff]
        %v637 = vld [vmem:[%s526 + $0x80] sm:$0xff]
        %v638 = vld [vmem:[%s526 + $0x88] sm:$0xff]
        %v639 = vld [vmem:[%s526 + $0x90] sm:$0xff]
        %v640 = vld [vmem:[%s526 + $0x98] sm:$0xff]
        %v641 = vld [vmem:[%s526 + $0xa0] sm:$0xff]
        %v642 = vld [vmem:[%s526 + $0xa8] sm:$0xff]
        %v643 = vld [vmem:[%s526 + $0xb0] sm:$0xff]
        %v644 = vld [vmem:[%s526 + $0xb8] sm:$0xff]
        %v645 = vld [vmem:[%s526 + $0xc0] sm:$0xff]
        %v646 = vld [vmem:[%s526 + $0xc8] sm:$0xff]
        %v647 = vld [vmem:[%s526 + $0xd0] sm:$0xff]
        %v648 = vld [vmem:[%s526 + $0xd8] sm:$0xff]
        %v649 = vld [vmem:[%s526 + $0xe0] sm:$0xff]
        %v650 = vld [vmem:[%s526 + $0xe8] sm:$0xff]
        %v651 = vld [vmem:[%s526 + $0xf0] sm:$0xff]
        %v652 = vld [vmem:[%s526 + $0xf8] sm:$0xff]
        %v653 = vld [vmem:[%s526 + $0x100] sm:$0xff]
        %v654 = vld [vmem:[%s526 + $0x108] sm:$0xff]
        %v655 = vld [vmem:[%s526 + $0x110] sm:$0xff]
        %v656 = vld [vmem:[%s526 + $0x118] sm:$0xff]
        %v657 = vld [vmem:[%s526 + $0x120] sm:$0xff]
        %v658 = vld [vmem:[%s526 + $0x128] sm:$0xff]
        %v659 = vld [vmem:[%s526 + $0x130] sm:$0xff]
        %v660 = vld [vmem:[%s526 + $0x138] sm:$0xff]
        %v661 = vld [vmem:[%s526 + $0x140] sm:$0xff]
        %v662 = vld [vmem:[%s526 + $0x148] sm:$0xff]
        %v663 = vld [vmem:[%s526 + $0x150] sm:$0xff]
        %v664 = vld [vmem:[%s526 + $0x158] sm:$0xff]
        %v665 = vld [vmem:[%s526 + $0x160] sm:$0xff]
        %v666 = vld [vmem:[%s526 + $0x168] sm:$0xff]
        %v667 = vld [vmem:[%s526 + $0x170] sm:$0xff]
        %v668 = vld [vmem:[%s526 + $0x178] sm:$0xff]
        %v669 = vld [vmem:[%s526 + $0x180] sm:$0xff]
        %v670 = vld [vmem:[%s526 + $0x188] sm:$0xff]
        %v671 = vld [vmem:[%s526 + $0x190] sm:$0xff]
        %v672 = vld [vmem:[%s526 + $0x198] sm:$0xff]
        %v673 = vld [vmem:[%s526 + $0x1a0] sm:$0xff]
        %v674 = vld [vmem:[%s526 + $0x1a8] sm:$0xff]
        %v675 = vld [vmem:[%s526 + $0x1b0] sm:$0xff]
        %v676 = vld [vmem:[%s526 + $0x1b8] sm:$0xff]
        %v677 = vld [vmem:[%s526 + $0x1c0] sm:$0xff]
        %v678 = vld [vmem:[%s526 + $0x1c8] sm:$0xff]
        %v679 = vld [vmem:[%s526 + $0x1d0] sm:$0xff]
        %v680 = vld [vmem:[%s526 + $0x1d8] sm:$0xff]
        %v681 = vld [vmem:[%s526 + $0x1e0] sm:$0xff]
        %v682 = vld [vmem:[%s526 + $0x1e8] sm:$0xff]
        %v683 = vld [vmem:[%s526 + $0x1f0] sm:$0xff]
        %v684 = vld [vmem:[%s526 + $0x1f8] sm:$0xff]
        %v685 = vld [vmem:[%s526 + $0x200] sm:$0xff]
        %v686 = vld [vmem:[%s526 + $0x208] sm:$0xff]
        %v687 = vld [vmem:[%s526 + $0x210] sm:$0xff]
        %v688 = vld [vmem:[%s526 + $0x218] sm:$0xff]
        %v689 = vld [vmem:[%s526 + $0x220] sm:$0xff]
        %v690 = vld [vmem:[%s526 + $0x228] sm:$0xff]
        %v691 = vld [vmem:[%s526 + $0x230] sm:$0xff]
        %v692 = vld [vmem:[%s526 + $0x238] sm:$0xff]
        %v693 = vld [vmem:[%s526 + $0x240] sm:$0xff]
        %v694 = vld [vmem:[%s526 + $0x248] sm:$0xff]
        %v695 = vld [vmem:[%s526 + $0x250] sm:$0xff]
        %v696 = vld [vmem:[%s526 + $0x258] sm:$0xff]
        %v697 = vld [vmem:[%s526 + $0x260] sm:$0xff]
        %v698 = vld [vmem:[%s526 + $0x268] sm:$0xff]
        %v699 = vld [vmem:[%s526 + $0x270] sm:$0xff]
        %v700 = vld [vmem:[%s526 + $0x278] sm:$0xff]
        %v701 = vld [vmem:[%s526 + $0x280] sm:$0xff]
        %v702 = vld [vmem:[%s526 + $0x288] sm:$0xff]
        %v703 = vld [vmem:[%s526 + $0x290] sm:$0xff]
        %v704 = vld [vmem:[%s526 + $0x298] sm:$0xff]
        %v705 = vld [vmem:[%s526 + $0x2a0] sm:$0xff]
        %v706 = vld [vmem:[%s526 + $0x2a8] sm:$0xff]
        %v707 = vld [vmem:[%s526 + $0x2b0] sm:$0xff]
        %v708 = vld [vmem:[%s526 + $0x2b8] sm:$0xff]
        %v709 = vld [vmem:[%s526 + $0x2c0] sm:$0xff]
        %v710 = vld [vmem:[%s526 + $0x2c8] sm:$0xff]
        %v711 = vld [vmem:[%s526 + $0x2d0] sm:$0xff]
        %v712 = vld [vmem:[%s526 + $0x2d8] sm:$0xff]
        %v713 = vld [vmem:[%s526 + $0x2e0] sm:$0xff]
        %v714 = vld [vmem:[%s526 + $0x2e8] sm:$0xff]
        %v715 = vld [vmem:[%s526 + $0x2f0] sm:$0xff]
        %v716 = vld [vmem:[%s526 + $0x2f8] sm:$0xff]
        %v717 = vld [vmem:[%s535] sm:$0xff]
        %v718 = vld [vmem:[%s535 + $0x8] sm:$0xff]
        %v719 = vld [vmem:[%s535 + $0x10] sm:$0xff]
        %v720 = vld [vmem:[%s535 + $0x18] sm:$0xff]
        %v721 = vld [vmem:[%s535 + $0x20] sm:$0xff]
        %v722 = vld [vmem:[%s535 + $0x28] sm:$0xff]
        %v723 = vld [vmem:[%s535 + $0x30] sm:$0xff]
        %v724 = vld [vmem:[%s535 + $0x38] sm:$0xff]
        %v725 = vld [vmem:[%s535 + $0x40] sm:$0xff]
        %v726 = vld [vmem:[%s535 + $0x48] sm:$0xff]
        %v727 = vld [vmem:[%s535 + $0x50] sm:$0xff]
        %v728 = vld [vmem:[%s535 + $0x58] sm:$0xff]
        %v729 = vld [vmem:[%s535 + $0x60] sm:$0xff]
        %v730 = vld [vmem:[%s535 + $0x68] sm:$0xff]
        %v731 = vld [vmem:[%s535 + $0x70] sm:$0xff]
        %v732 = vld [vmem:[%s535 + $0x78] sm:$0xff]
        %v733 = vld [vmem:[%s535 + $0x80] sm:$0xff]
        %v734 = vld [vmem:[%s535 + $0x88] sm:$0xff]
        %v735 = vld [vmem:[%s535 + $0x90] sm:$0xff]
        %v736 = vld [vmem:[%s535 + $0x98] sm:$0xff]
        %v737 = vld [vmem:[%s535 + $0xa0] sm:$0xff]
        %v738 = vld [vmem:[%s535 + $0xa8] sm:$0xff]
        %v739 = vld [vmem:[%s535 + $0xb0] sm:$0xff]
        %v740 = vld [vmem:[%s535 + $0xb8] sm:$0xff]
        %v741 = vld [vmem:[%s535 + $0xc0] sm:$0xff]
        %v742 = vld [vmem:[%s535 + $0xc8] sm:$0xff]
        %v743 = vld [vmem:[%s535 + $0xd0] sm:$0xff]
        %v744 = vld [vmem:[%s535 + $0xd8] sm:$0xff]
        %v745 = vld [vmem:[%s535 + $0xe0] sm:$0xff]
        %v746 = vld [vmem:[%s535 + $0xe8] sm:$0xff]
        %v747 = vld [vmem:[%s535 + $0xf0] sm:$0xff]
        %v748 = vld [vmem:[%s535 + $0xf8] sm:$0xff]
        %v749 = vld [vmem:[%s535 + $0x100] sm:$0xff]
        %v750 = vld [vmem:[%s535 + $0x108] sm:$0xff]
        %v751 = vld [vmem:[%s535 + $0x110] sm:$0xff]
        %v752 = vld [vmem:[%s535 + $0x118] sm:$0xff]
        %v753 = vld [vmem:[%s535 + $0x120] sm:$0xff]
        %v754 = vld [vmem:[%s535 + $0x128] sm:$0xff]
        %v755 = vld [vmem:[%s535 + $0x130] sm:$0xff]
        %v756 = vld [vmem:[%s535 + $0x138] sm:$0xff]
        %v757 = vld [vmem:[%s535 + $0x140] sm:$0xff]
        %v758 = vld [vmem:[%s535 + $0x148] sm:$0xff]
        %v759 = vld [vmem:[%s535 + $0x150] sm:$0xff]
        %v760 = vld [vmem:[%s535 + $0x158] sm:$0xff]
        %v761 = vld [vmem:[%s535 + $0x160] sm:$0xff]
        %v762 = vld [vmem:[%s535 + $0x168] sm:$0xff]
        %v763 = vld [vmem:[%s535 + $0x170] sm:$0xff]
        %v764 = vld [vmem:[%s535 + $0x178] sm:$0xff]
        %v765 = vld [vmem:[%s535 + $0x180] sm:$0xff]
        %v766 = vld [vmem:[%s535 + $0x188] sm:$0xff]
        %v767 = vld [vmem:[%s535 + $0x190] sm:$0xff]
        %v768 = vld [vmem:[%s535 + $0x198] sm:$0xff]
        %v769 = vld [vmem:[%s535 + $0x1a0] sm:$0xff]
        %v770 = vld [vmem:[%s535 + $0x1a8] sm:$0xff]
        %v771 = vld [vmem:[%s535 + $0x1b0] sm:$0xff]
        %v772 = vld [vmem:[%s535 + $0x1b8] sm:$0xff]
        %v773 = vld [vmem:[%s535 + $0x1c0] sm:$0xff]
        %v774 = vld [vmem:[%s535 + $0x1c8] sm:$0xff]
        %v775 = vld [vmem:[%s535 + $0x1d0] sm:$0xff]
        %v776 = vld [vmem:[%s535 + $0x1d8] sm:$0xff]
        %v777 = vld [vmem:[%s535 + $0x1e0] sm:$0xff]
        %v778 = vld [vmem:[%s535 + $0x1e8] sm:$0xff]
        %v779 = vld [vmem:[%s535 + $0x1f0] sm:$0xff]
        %v780 = vld [vmem:[%s535 + $0x1f8] sm:$0xff]
        %v781 = vld [vmem:[%s535 + $0x200] sm:$0xff]
        %v782 = vld [vmem:[%s535 + $0x208] sm:$0xff]
        %v783 = vld [vmem:[%s535 + $0x210] sm:$0xff]
        %v784 = vld [vmem:[%s535 + $0x218] sm:$0xff]
        %v785 = vld [vmem:[%s535 + $0x220] sm:$0xff]
        %v786 = vld [vmem:[%s535 + $0x228] sm:$0xff]
        %v787 = vld [vmem:[%s535 + $0x230] sm:$0xff]
        %v788 = vld [vmem:[%s535 + $0x238] sm:$0xff]
        %v789 = vld [vmem:[%s535 + $0x240] sm:$0xff]
        %v790 = vld [vmem:[%s535 + $0x248] sm:$0xff]
        %v791 = vld [vmem:[%s535 + $0x250] sm:$0xff]
        %v792 = vld [vmem:[%s535 + $0x258] sm:$0xff]
        %v793 = vld [vmem:[%s535 + $0x260] sm:$0xff]
        %v794 = vld [vmem:[%s535 + $0x268] sm:$0xff]
        %v795 = vld [vmem:[%s535 + $0x270] sm:$0xff]
        %v796 = vld [vmem:[%s535 + $0x278] sm:$0xff]
        %v797 = vld [vmem:[%s535 + $0x280] sm:$0xff]
        %v798 = vld [vmem:[%s535 + $0x288] sm:$0xff]
        %v799 = vld [vmem:[%s535 + $0x290] sm:$0xff]
        %v800 = vld [vmem:[%s535 + $0x298] sm:$0xff]
        %v801 = vld [vmem:[%s535 + $0x2a0] sm:$0xff]
        %v802 = vld [vmem:[%s535 + $0x2a8] sm:$0xff]
        %v803 = vld [vmem:[%s535 + $0x2b0] sm:$0xff]
        %v804 = vld [vmem:[%s535 + $0x2b8] sm:$0xff]
        %v805 = vld [vmem:[%s535 + $0x2c0] sm:$0xff]
        %v806 = vld [vmem:[%s535 + $0x2c8] sm:$0xff]
        %v807 = vld [vmem:[%s535 + $0x2d0] sm:$0xff]
        %v808 = vld [vmem:[%s535 + $0x2d8] sm:$0xff]
        %v809 = vld [vmem:[%s535 + $0x2e0] sm:$0xff]
        %v810 = vld [vmem:[%s535 + $0x2e8] sm:$0xff]
        %v811 = vld [vmem:[%s535 + $0x2f0] sm:$0xff]
        %v812 = vld [vmem:[%s535 + $0x2f8] sm:$0xff]
        %v813 = vld [vmem:[#allocation10] sm:$0xff]
        %v814 = vld [vmem:[#allocation10 + $0x8] sm:$0xff]
        %v815 = vld [vmem:[#allocation10 + $0x10] sm:$0xff]
        %v816 = vld [vmem:[#allocation10 + $0x18] sm:$0xff]
        %v817 = vld [vmem:[#allocation10 + $0x20] sm:$0xff]
        %v818 = vld [vmem:[#allocation10 + $0x28] sm:$0xff]
        %v819 = vld [vmem:[#allocation10 + $0x30] sm:$0xff]
        %v820 = vld [vmem:[#allocation10 + $0x38] sm:$0xff]
        %v821 = vld [vmem:[#allocation10 + $0x40] sm:$0xff]
        %v822 = vld [vmem:[#allocation10 + $0x48] sm:$0xff]
        %v823 = vld [vmem:[#allocation10 + $0x50] sm:$0xff]
        %v824 = vld [vmem:[#allocation10 + $0x58] sm:$0xff]
        %v825 = vld [vmem:[#allocation10 + $0x60] sm:$0xff]
        %v826 = vld [vmem:[#allocation10 + $0x68] sm:$0xff]
        %v827 = vld [vmem:[#allocation10 + $0x70] sm:$0xff]
        %v828 = vld [vmem:[#allocation10 + $0x78] sm:$0xff]
        %v829 = vld [vmem:[#allocation10 + $0x80] sm:$0xff]
        %v830 = vld [vmem:[#allocation10 + $0x88] sm:$0xff]
        %v831 = vld [vmem:[#allocation10 + $0x90] sm:$0xff]
        %v832 = vld [vmem:[#allocation10 + $0x98] sm:$0xff]
        %v833 = vld [vmem:[#allocation10 + $0xa0] sm:$0xff]
        %v834 = vld [vmem:[#allocation10 + $0xa8] sm:$0xff]
        %v835 = vld [vmem:[#allocation10 + $0xb0] sm:$0xff]
        %v836 = vld [vmem:[#allocation10 + $0xb8] sm:$0xff]
        %v837 = vld [vmem:[#allocation10 + $0xc0] sm:$0xff]
        %v838 = vld [vmem:[#allocation10 + $0xc8] sm:$0xff]
        %v839 = vld [vmem:[#allocation10 + $0xd0] sm:$0xff]
        %v840 = vld [vmem:[#allocation10 + $0xd8] sm:$0xff]
        %v841 = vld [vmem:[#allocation10 + $0xe0] sm:$0xff]
        %v842 = vld [vmem:[#allocation10 + $0xe8] sm:$0xff]
        %v843 = vld [vmem:[#allocation10 + $0xf0] sm:$0xff]
        %v844 = vld [vmem:[#allocation10 + $0xf8] sm:$0xff]
        %v845 = vld [vmem:[#allocation10 + $0x100] sm:$0xff]
        %v846 = vld [vmem:[#allocation10 + $0x108] sm:$0xff]
        %v847 = vld [vmem:[#allocation10 + $0x110] sm:$0xff]
        %v848 = vld [vmem:[#allocation10 + $0x118] sm:$0xff]
        %v849 = vld [vmem:[#allocation10 + $0x120] sm:$0xff]
        %v850 = vld [vmem:[#allocation10 + $0x128] sm:$0xff]
        %v851 = vld [vmem:[#allocation10 + $0x130] sm:$0xff]
        %v852 = vld [vmem:[#allocation10 + $0x138] sm:$0xff]
        %v853 = vld [vmem:[#allocation10 + $0x140] sm:$0xff]
        %v854 = vld [vmem:[#allocation10 + $0x148] sm:$0xff]
        %v855 = vld [vmem:[#allocation10 + $0x150] sm:$0xff]
        %v856 = vld [vmem:[#allocation10 + $0x158] sm:$0xff]
        %v857 = vld [vmem:[#allocation10 + $0x160] sm:$0xff]
        %v858 = vld [vmem:[#allocation10 + $0x168] sm:$0xff]
        %v859 = vld [vmem:[#allocation10 + $0x170] sm:$0xff]
        %v860 = vld [vmem:[#allocation10 + $0x178] sm:$0xff]
        %v861 = vld [vmem:[#allocation10 + $0x180] sm:$0xff]
        %v862 = vld [vmem:[#allocation10 + $0x188] sm:$0xff]
        %v863 = vld [vmem:[#allocation10 + $0x190] sm:$0xff]
        %v864 = vld [vmem:[#allocation10 + $0x198] sm:$0xff]
        %v865 = vld [vmem:[#allocation10 + $0x1a0] sm:$0xff]
        %v866 = vld [vmem:[#allocation10 + $0x1a8] sm:$0xff]
        %v867 = vld [vmem:[#allocation10 + $0x1b0] sm:$0xff]
        %v868 = vld [vmem:[#allocation10 + $0x1b8] sm:$0xff]
        %v869 = vld [vmem:[#allocation10 + $0x1c0] sm:$0xff]
        %v870 = vld [vmem:[#allocation10 + $0x1c8] sm:$0xff]
        %v871 = vld [vmem:[#allocation10 + $0x1d0] sm:$0xff]
        %v872 = vld [vmem:[#allocation10 + $0x1d8] sm:$0xff]
        %v873 = vld [vmem:[#allocation10 + $0x1e0] sm:$0xff]
        %v874 = vld [vmem:[#allocation10 + $0x1e8] sm:$0xff]
        %v875 = vld [vmem:[#allocation10 + $0x1f0] sm:$0xff]
        %v876 = vld [vmem:[#allocation10 + $0x1f8] sm:$0xff]
        %v877 = vld [vmem:[#allocation10 + $0x200] sm:$0xff]
        %v878 = vld [vmem:[#allocation10 + $0x208] sm:$0xff]
        %v879 = vld [vmem:[#allocation10 + $0x210] sm:$0xff]
        %v880 = vld [vmem:[#allocation10 + $0x218] sm:$0xff]
        %v881 = vld [vmem:[#allocation10 + $0x220] sm:$0xff]
        %v882 = vld [vmem:[#allocation10 + $0x228] sm:$0xff]
        %v883 = vld [vmem:[#allocation10 + $0x230] sm:$0xff]
        %v884 = vld [vmem:[#allocation10 + $0x238] sm:$0xff]
        %v885 = vld [vmem:[#allocation10 + $0x240] sm:$0xff]
        %v886 = vld [vmem:[#allocation10 + $0x248] sm:$0xff]
        %v887 = vld [vmem:[#allocation10 + $0x250] sm:$0xff]
        %v888 = vld [vmem:[#allocation10 + $0x258] sm:$0xff]
        %v889 = vld [vmem:[#allocation10 + $0x260] sm:$0xff]
        %v890 = vld [vmem:[#allocation10 + $0x268] sm:$0xff]
        %v891 = vld [vmem:[#allocation10 + $0x270] sm:$0xff]
        %v892 = vld [vmem:[#allocation10 + $0x278] sm:$0xff]
        %v893 = vld [vmem:[#allocation10 + $0x280] sm:$0xff]
        %v894 = vld [vmem:[#allocation10 + $0x288] sm:$0xff]
        %v895 = vld [vmem:[#allocation10 + $0x290] sm:$0xff]
        %v896 = vld [vmem:[#allocation10 + $0x298] sm:$0xff]
        %v897 = vld [vmem:[#allocation10 + $0x2a0] sm:$0xff]
        %v898 = vld [vmem:[#allocation10 + $0x2a8] sm:$0xff]
        %v899 = vld [vmem:[#allocation10 + $0x2b0] sm:$0xff]
        %v900 = vld [vmem:[#allocation10 + $0x2b8] sm:$0xff]
        %v901 = vld [vmem:[#allocation10 + $0x2c0] sm:$0xff]
        %v902 = vld [vmem:[#allocation10 + $0x2c8] sm:$0xff]
        %v903 = vld [vmem:[#allocation10 + $0x2d0] sm:$0xff]
        %v904 = vld [vmem:[#allocation10 + $0x2d8] sm:$0xff]
        %v905 = vld [vmem:[#allocation10 + $0x2e0] sm:$0xff]
        %v906 = vld [vmem:[#allocation10 + $0x2e8] sm:$0xff]
        %v907 = vld [vmem:[#allocation10 + $0x2f0] sm:$0xff]
        %v908 = vld [vmem:[#allocation10 + $0x2f8] sm:$0xff]
        %v909 = vld [vmem:[%s6] sm:$0x1]
        %v911 = vlaneseq
        %v912 = vshrl.u32 %v911, 7
        %v913 = vsub.s32 0, %v912
        %v914 = vrot.slane %v909, %v913
        %916 = vmatprep.subr.mxu0 0.0
        %917 = vmatpush1.msra.mxu0 %v813
        %918 = vmatprep.subr.mxu0 0.0
        %919 = vmatpush1.msra.mxu0 %v814
        %920 = vmatprep.subr.mxu0 0.0
        %921 = vmatpush1.msra.mxu0 %v815
        %922 = vmatprep.subr.mxu0 0.0
        %923 = vmatpush1.msra.mxu0 %v816
        %924 = vmatprep.subr.mxu0 0.0
        %925 = vmatpush1.msra.mxu0 %v817
        %926 = vmatprep.subr.mxu0 0.0
        %927 = vmatpush1.msra.mxu0 %v818
        %928 = vmatprep.subr.mxu0 0.0
        %929 = vmatpush1.msra.mxu0 %v819
        %930 = vmatprep.subr.mxu0 0.0
        %931 = vmatpush1.msra.mxu0 %v820
        %932 = vmatprep.subr.mxu0 0.0
        %933 = vmatpush1.msra.mxu0 %v821
        %934 = vmatprep.subr.mxu0 0.0
        %935 = vmatpush1.msra.mxu0 %v822
        %936 = vmatprep.subr.mxu0 0.0
        %937 = vmatpush1.msra.mxu0 %v823
        %938 = vmatprep.subr.mxu0 0.0
        %939 = vmatpush1.msra.mxu0 %v824
        %940 = vmatprep.subr.mxu0 0.0
        %941 = vmatpush1.msra.mxu0 %v825
        %942 = vmatprep.subr.mxu0 0.0
        %943 = vmatpush1.msra.mxu0 %v826
        %944 = vmatprep.subr.mxu0 0.0
        %945 = vmatpush1.msra.mxu0 %v827
        %946 = vmatprep.subr.mxu0 0.0
        %947 = vmatpush1.msra.mxu0 %v828
        %948 = vmatprep.subr.mxu0 0.0
        %949 = vmatpush1.msra.mxu0 %v829
        %950 = vmatprep.subr.mxu0 0.0
        %951 = vmatpush1.msra.mxu0 %v830
        %952 = vmatprep.subr.mxu0 0.0
        %953 = vmatpush1.msra.mxu0 %v831
        %954 = vmatprep.subr.mxu0 0.0
        %955 = vmatpush1.msra.mxu0 %v832
        %956 = vmatprep.subr.mxu0 0.0
        %957 = vmatpush1.msra.mxu0 %v833
        %958 = vmatprep.subr.mxu0 0.0
        %959 = vmatpush1.msra.mxu0 %v834
        %960 = vmatprep.subr.mxu0 0.0
        %961 = vmatpush1.msra.mxu0 %v835
        %962 = vmatprep.subr.mxu0 0.0
        %963 = vmatpush1.msra.mxu0 %v836
        %964 = vmatprep.subr.mxu0 0.0
        %965 = vmatpush1.msra.mxu0 %v837
        %966 = vmatprep.subr.mxu0 0.0
        %967 = vmatpush1.msra.mxu0 %v838
        %968 = vmatprep.subr.mxu0 0.0
        %969 = vmatpush1.msra.mxu0 %v839
        %970 = vmatprep.subr.mxu0 0.0
        %971 = vmatpush1.msra.mxu0 %v840
        %972 = vmatprep.subr.mxu0 0.0
        %973 = vmatpush1.msra.mxu0 %v841
        %974 = vmatprep.subr.mxu0 0.0
        %975 = vmatpush1.msra.mxu0 %v842
        %976 = vmatprep.subr.mxu0 0.0
        %977 = vmatpush1.msra.mxu0 %v843
        %978 = vmatprep.subr.mxu0 0.0
        %979 = vmatpush1.msra.mxu0 %v844
        %980 = vmatprep.mubr.f32.mxu0 %v622
        %981 = vmatmul.mubr.f32.gmra.mrb[0].mxu0 %v621
        %v982 = vpop.f32.mrb[0].mxu0
        %v983 = vadd.f32 %v914, %v982
        %v984 = vpop.f32.mrb[0].mxu0
        %985 = vmatprep.mubr.f32.mxu0 %v628
        %986 = vmatmul.mubr.f32.gmra.mrb[0].mxu0 %v627
        %v987 = vpop.f32.mrb[0].mxu0
        %v988 = vadd.f32 %v914, %v987
        %v989 = vpop.f32.mrb[0].mxu0
        %990 = vmatprep.mubr.f32.mxu0 %v634
        %991 = vmatmul.mubr.f32.gmra.mrb[0].mxu0 %v633
        %v992 = vpop.f32.mrb[0].mxu0
        %v993 = vadd.f32 %v914, %v992
        %v994 = vpop.f32.mrb[0].mxu0
        %995 = vmatprep.mubr.f32.mxu0 %v640
        %996 = vmatmul.mubr.f32.gmra.mrb[0].mxu0 %v639
        %v997 = vpop.f32.mrb[0].mxu0
        %v998 = vadd.f32 %v914, %v997
        %v999 = vpop.f32.mrb[0].mxu0
        %1000 = vmatprep.mubr.f32.mxu0 %v646
        %1001 = vmatmul.mubr.f32.gmra.mrb[0].mxu0 %v645
        %v1002 = vpop.f32.mrb[0].mxu0
        %v1003 = vadd.f32 %v914, %v1002
        %v1004 = vpop.f32.mrb[0].mxu0
        %1005 = vmatprep.mubr.f32.mxu0 %v652
        %1006 = vmatmul.mubr.f32.gmra.mrb[0].mxu0 %v651
        %v1007 = vpop.f32.mrb[0].mxu0
        %v1008 = vadd.f32 %v914, %v1007
        %v1009 = vpop.f32.mrb[0].mxu0
        %1010 = vmatprep.mubr.f32.mxu0 %v658
        %1011 = vmatmul.mubr.f32.gmra.mrb[0].mxu0 %v657
        %v1012 = vpop.f32.mrb[0].mxu0
        %v1013 = vadd.f32 %v914, %v1012
        %v1014 = vpop.f32.mrb[0].mxu0
        %1015 = vmatprep.mubr.f32.mxu0 %v664
        %1016 = vmatmul.mubr.f32.gmra.mrb[0].mxu0 %v663
        %v1017 = vpop.f32.mrb[0].mxu0
        %v1018 = vadd.f32 %v914, %v1017
        %v1019 = vpop.f32.mrb[0].mxu0
        %1020 = vmatprep.mubr.f32.mxu0 %v670
        %1021 = vmatmul.mubr.f32.gmra.mrb[0].mxu0 %v669
        %v1022 = vpop.f32.mrb[0].mxu0
        %v1023 = vadd.f32 %v914, %v1022
        %v1024 = vpop.f32.mrb[0].mxu0
        %1025 = vmatprep.mubr.f32.mxu0 %v676
        %1026 = vmatmul.mubr.f32.gmra.mrb[0].mxu0 %v675
        %v1027 = vpop.f32.mrb[0].mxu0
        %v1028 = vadd.f32 %v914, %v1027
        %v1029 = vpop.f32.mrb[0].mxu0
        %1030 = vmatprep.mubr.f32.mxu0 %v682
        %1031 = vmatmul.mubr.f32.gmra.mrb[0].mxu0 %v681
        %v1032 = vpop.f32.mrb[0].mxu0
        %v1033 = vadd.f32 %v914, %v1032
        %v1034 = vpop.f32.mrb[0].mxu0
        %1035 = vmatprep.mubr.f32.mxu0 %v688
        %1036 = vmatmul.mubr.f32.gmra.mrb[0].mxu0 %v687
        %v1037 = vpop.f32.mrb[0].mxu0
        %v1038 = vadd.f32 %v914, %v1037
        %v1039 = vpop.f32.mrb[0].mxu0
        %1040 = vmatprep.mubr.f32.mxu0 %v694
        %1041 = vmatmul.mubr.f32.gmra.mrb[0].mxu0 %v693
        %v1042 = vpop.f32.mrb[0].mxu0
        %v1043 = vadd.f32 %v914, %v1042
        %v1044 = vpop.f32.mrb[0].mxu0
        %1045 = vmatprep.mubr.f32.mxu0 %v700
        %1046 = vmatmul.mubr.f32.gmra.mrb[0].mxu0 %v699
        %v1047 = vpop.f32.mrb[0].mxu0
        %v1048 = vadd.f32 %v914, %v1047
        %v1049 = vpop.f32.mrb[0].mxu0
        %1050 = vmatprep.mubr.f32.mxu0 %v706
        %1051 = vmatmul.mubr.f32.gmra.mrb[0].mxu0 %v705
        %v1052 = vpop.f32.mrb[0].mxu0
        %v1053 = vadd.f32 %v914, %v1052
        %v1054 = vpop.f32.mrb[0].mxu0
        %1055 = vmatprep.mubr.f32.mxu0 %v712
        %1056 = vmatmul.mubr.f32.gmra.mrb[0].mxu0 %v711
        %v1057 = vpop.f32.mrb[0].mxu0
        %v1058 = vadd.f32 %v914, %v1057
        %v1059 = vpop.f32.mrb[0].mxu0
        %1060 = vdwg.mxu0
        %1061 = vmatprep.subr.mxu0 0.0
        %1062 = vmatpush1.msra.mxu0 %v845
        %1063 = vmatprep.subr.mxu0 0.0
        %1064 = vmatpush1.msra.mxu0 %v846
        %1065 = vmatprep.subr.mxu0 0.0
        %1066 = vmatpush1.msra.mxu0 %v847
        %1067 = vmatprep.subr.mxu0 0.0
        %1068 = vmatpush1.msra.mxu0 %v848
        %1069 = vmatprep.subr.mxu0 0.0
        %1070 = vmatpush1.msra.mxu0 %v849
        %1071 = vmatprep.subr.mxu0 0.0
        %1072 = vmatpush1.msra.mxu0 %v850
        %1073 = vmatprep.subr.mxu0 0.0
        %1074 = vmatpush1.msra.mxu0 %v851
        %1075 = vmatprep.subr.mxu0 0.0
        %1076 = vmatpush1.msra.mxu0 %v852
        %1077 = vmatprep.subr.mxu0 0.0
        %1078 = vmatpush1.msra.mxu0 %v853
        %1079 = vmatprep.subr.mxu0 0.0
        %1080 = vmatpush1.msra.mxu0 %v854
        %1081 = vmatprep.subr.mxu0 0.0
        %1082 = vmatpush1.msra.mxu0 %v855
        %1083 = vmatprep.subr.mxu0 0.0
        %1084 = vmatpush1.msra.mxu0 %v856
        %1085 = vmatprep.subr.mxu0 0.0
        %1086 = vmatpush1.msra.mxu0 %v857
        %1087 = vmatprep.subr.mxu0 0.0
        %1088 = vmatpush1.msra.mxu0 %v858
        %1089 = vmatprep.subr.mxu0 0.0
        %1090 = vmatpush1.msra.mxu0 %v859
        %1091 = vmatprep.subr.mxu0 0.0
        %1092 = vmatpush1.msra.mxu0 %v860
        %1093 = vmatprep.subr.mxu0 0.0
        %1094 = vmatpush1.msra.mxu0 %v861
        %1095 = vmatprep.subr.mxu0 0.0
        %1096 = vmatpush1.msra.mxu0 %v862
        %1097 = vmatprep.subr.mxu0 0.0
        %1098 = vmatpush1.msra.mxu0 %v863
        %1099 = vmatprep.subr.mxu0 0.0
        %1100 = vmatpush1.msra.mxu0 %v864
        %1101 = vmatprep.subr.mxu0 0.0
        %1102 = vmatpush1.msra.mxu0 %v865
        %1103 = vmatprep.subr.mxu0 0.0
        %1104 = vmatpush1.msra.mxu0 %v866
        %1105 = vmatprep.subr.mxu0 0.0
        %1106 = vmatpush1.msra.mxu0 %v867
        %1107 = vmatprep.subr.mxu0 0.0
        %1108 = vmatpush1.msra.mxu0 %v868
        %1109 = vmatprep.subr.mxu0 0.0
        %1110 = vmatpush1.msra.mxu0 %v869
        %1111 = vmatprep.subr.mxu0 0.0
        %1112 = vmatpush1.msra.mxu0 %v870
        %1113 = vmatprep.subr.mxu0 0.0
        %1114 = vmatpush1.msra.mxu0 %v871
        %1115 = vmatprep.subr.mxu0 0.0
        %1116 = vmatpush1.msra.mxu0 %v872
        %1117 = vmatprep.subr.mxu0 0.0
        %1118 = vmatpush1.msra.mxu0 %v873
        %1119 = vmatprep.subr.mxu0 0.0
        %1120 = vmatpush1.msra.mxu0 %v874
        %1121 = vmatprep.subr.mxu0 0.0
        %1122 = vmatpush1.msra.mxu0 %v875
        %1123 = vmatprep.subr.mxu0 0.0
        %1124 = vmatpush1.msra.mxu0 %v876
        %1125 = vmatprep.mubr.f32.mxu0 %v624
        %1126 = vmatmul.mubr.f32.gmra.mrb[0].mxu0 %v623
        %v1127 = vpop.f32.mrb[0].mxu0
        %v1128 = vadd.f32 %v983, %v1127
        %v1129 = vpop.f32.mrb[0].mxu0
        %1130 = vmatprep.mubr.f32.mxu0 %v630
        %1131 = vmatmul.mubr.f32.gmra.mrb[0].mxu0 %v629
        %v1132 = vpop.f32.mrb[0].mxu0
        %v1133 = vadd.f32 %v988, %v1132
        %v1134 = vpop.f32.mrb[0].mxu0
        %1135 = vmatprep.mubr.f32.mxu0 %v636
        %1136 = vmatmul.mubr.f32.gmra.mrb[0].mxu0 %v635
        %v1137 = vpop.f32.mrb[0].mxu0
        %v1138 = vadd.f32 %v993, %v1137
        %v1139 = vpop.f32.mrb[0].mxu0
        %1140 = vmatprep.mubr.f32.mxu0 %v642
        %1141 = vmatmul.mubr.f32.gmra.mrb[0].mxu0 %v641
        %v1142 = vpop.f32.mrb[0].mxu0
        %v1143 = vadd.f32 %v998, %v1142
        %v1144 = vpop.f32.mrb[0].mxu0
        %1145 = vmatprep.mubr.f32.mxu0 %v648
        %1146 = vmatmul.mubr.f32.gmra.mrb[0].mxu0 %v647
        %v1147 = vpop.f32.mrb[0].mxu0
        %v1148 = vadd.f32 %v1003, %v1147
        %v1149 = vpop.f32.mrb[0].mxu0
        %1150 = vmatprep.mubr.f32.mxu0 %v654
        %1151 = vmatmul.mubr.f32.gmra.mrb[0].mxu0 %v653
        %v1152 = vpop.f32.mrb[0].mxu0
        %v1153 = vadd.f32 %v1008, %v1152
        %v1154 = vpop.f32.mrb[0].mxu0
        %1155 = vmatprep.mubr.f32.mxu0 %v660
        %1156 = vmatmul.mubr.f32.gmra.mrb[0].mxu0 %v659
        %v1157 = vpop.f32.mrb[0].mxu0
        %v1158 = vadd.f32 %v1013, %v1157
        %v1159 = vpop.f32.mrb[0].mxu0
        %1160 = vmatprep.mubr.f32.mxu0 %v666
        %1161 = vmatmul.mubr.f32.gmra.mrb[0].mxu0 %v665
        %v1162 = vpop.f32.mrb[0].mxu0
        %v1163 = vadd.f32 %v1018, %v1162
        %v1164 = vpop.f32.mrb[0].mxu0
        %1165 = vmatprep.mubr.f32.mxu0 %v672
        %1166 = vmatmul.mubr.f32.gmra.mrb[0].mxu0 %v671
        %v1167 = vpop.f32.mrb[0].mxu0
        %v1168 = vadd.f32 %v1023, %v1167
        %v1169 = vpop.f32.mrb[0].mxu0
        %1170 = vmatprep.mubr.f32.mxu0 %v678
        %1171 = vmatmul.mubr.f32.gmra.mrb[0].mxu0 %v677
        %v1172 = vpop.f32.mrb[0].mxu0
        %v1173 = vadd.f32 %v1028, %v1172
        %v1174 = vpop.f32.mrb[0].mxu0
        %1175 = vmatprep.mubr.f32.mxu0 %v684
        %1176 = vmatmul.mubr.f32.gmra.mrb[0].mxu0 %v683
        %v1177 = vpop.f32.mrb[0].mxu0
        %v1178 = vadd.f32 %v1033, %v1177
        %v1179 = vpop.f32.mrb[0].mxu0
        %1180 = vmatprep.mubr.f32.mxu0 %v690
        %1181 = vmatmul.mubr.f32.gmra.mrb[0].mxu0 %v689
        %v1182 = vpop.f32.mrb[0].mxu0
        %v1183 = vadd.f32 %v1038, %v1182
        %v1184 = vpop.f32.mrb[0].mxu0
        %1185 = vmatprep.mubr.f32.mxu0 %v696
        %1186 = vmatmul.mubr.f32.gmra.mrb[0].mxu0 %v695
        %v1187 = vpop.f32.mrb[0].mxu0
        %v1188 = vadd.f32 %v1043, %v1187
        %v1189 = vpop.f32.mrb[0].mxu0
        %1190 = vmatprep.mubr.f32.mxu0 %v702
        %1191 = vmatmul.mubr.f32.gmra.mrb[0].mxu0 %v701
        %v1192 = vpop.f32.mrb[0].mxu0
        %v1193 = vadd.f32 %v1048, %v1192
        %v1194 = vpop.f32.mrb[0].mxu0
        %1195 = vmatprep.mubr.f32.mxu0 %v708
        %1196 = vmatmul.mubr.f32.gmra.mrb[0].mxu0 %v707
        %v1197 = vpop.f32.mrb[0].mxu0
        %v1198 = vadd.f32 %v1053, %v1197
        %v1199 = vpop.f32.mrb[0].mxu0
        %1200 = vmatprep.mubr.f32.mxu0 %v714
        %1201 = vmatmul.mubr.f32.gmra.mrb[0].mxu0 %v713
        %v1202 = vpop.f32.mrb[0].mxu0
        %v1203 = vadd.f32 %v1058, %v1202
        %v1204 = vpop.f32.mrb[0].mxu0
        %1205 = vdwg.mxu0
        %1206 = vmatprep.subr.mxu0 0.0
        %1207 = vmatpush1.msra.mxu0 %v877
        %1208 = vmatprep.subr.mxu0 0.0
        %1209 = vmatpush1.msra.mxu0 %v878
        %1210 = vmatprep.subr.mxu0 0.0
        %1211 = vmatpush1.msra.mxu0 %v879
        %1212 = vmatprep.subr.mxu0 0.0
        %1213 = vmatpush1.msra.mxu0 %v880
        %1214 = vmatprep.subr.mxu0 0.0
        %1215 = vmatpush1.msra.mxu0 %v881
        %1216 = vmatprep.subr.mxu0 0.0
        %1217 = vmatpush1.msra.mxu0 %v882
        %1218 = vmatprep.subr.mxu0 0.0
        %1219 = vmatpush1.msra.mxu0 %v883
        %1220 = vmatprep.subr.mxu0 0.0
        %1221 = vmatpush1.msra.mxu0 %v884
        %1222 = vmatprep.subr.mxu0 0.0
        %1223 = vmatpush1.msra.mxu0 %v885
        %1224 = vmatprep.subr.mxu0 0.0
        %1225 = vmatpush1.msra.mxu0 %v886
        %1226 = vmatprep.subr.mxu0 0.0
        %1227 = vmatpush1.msra.mxu0 %v887
        %1228 = vmatprep.subr.mxu0 0.0
        %1229 = vmatpush1.msra.mxu0 %v888
        %1230 = vmatprep.subr.mxu0 0.0
        %1231 = vmatpush1.msra.mxu0 %v889
        %1232 = vmatprep.subr.mxu0 0.0
        %1233 = vmatpush1.msra.mxu0 %v890
        %1234 = vmatprep.subr.mxu0 0.0
        %1235 = vmatpush1.msra.mxu0 %v891
        %1236 = vmatprep.subr.mxu0 0.0
        %1237 = vmatpush1.msra.mxu0 %v892
        %1238 = vmatprep.subr.mxu0 0.0
        %1239 = vmatpush1.msra.mxu0 %v893
        %1240 = vmatprep.subr.mxu0 0.0
        %1241 = vmatpush1.msra.mxu0 %v894
        %1242 = vmatprep.subr.mxu0 0.0
        %1243 = vmatpush1.msra.mxu0 %v895
        %1244 = vmatprep.subr.mxu0 0.0
        %1245 = vmatpush1.msra.mxu0 %v896
        %1246 = vmatprep.subr.mxu0 0.0
        %1247 = vmatpush1.msra.mxu0 %v897
        %1248 = vmatprep.subr.mxu0 0.0
        %1249 = vmatpush1.msra.mxu0 %v898
        %1250 = vmatprep.subr.mxu0 0.0
        %1251 = vmatpush1.msra.mxu0 %v899
        %1252 = vmatprep.subr.mxu0 0.0
        %1253 = vmatpush1.msra.mxu0 %v900
        %1254 = vmatprep.subr.mxu0 0.0
        %1255 = vmatpush1.msra.mxu0 %v901
        %1256 = vmatprep.subr.mxu0 0.0
        %1257 = vmatpush1.msra.mxu0 %v902
        %1258 = vmatprep.subr.mxu0 0.0
        %1259 = vmatpush1.msra.mxu0 %v903
        %1260 = vmatprep.subr.mxu0 0.0
        %1261 = vmatpush1.msra.mxu0 %v904
        %1262 = vmatprep.subr.mxu0 0.0
        %1263 = vmatpush1.msra.mxu0 %v905
        %1264 = vmatprep.subr.mxu0 0.0
        %1265 = vmatpush1.msra.mxu0 %v906
        %1266 = vmatprep.subr.mxu0 0.0
        %1267 = vmatpush1.msra.mxu0 %v907
        %1268 = vmatprep.subr.mxu0 0.0
        %1269 = vmatpush1.msra.mxu0 %v908
        %1270 = vmatprep.mubr.f32.mxu0 %v626
        %1271 = vmatmul.mubr.f32.gmra.mrb[0].mxu0 %v625
        %v1272 = vpop.f32.mrb[0].mxu0
        %v1273 = vadd.f32 %v1128, %v1272
        %v1274 = vpop.f32.mrb[0].mxu0
        %1275 = vmatprep.mubr.f32.mxu0 %v632
        %1276 = vmatmul.mubr.f32.gmra.mrb[0].mxu0 %v631
        %v1277 = vpop.f32.mrb[0].mxu0
        %v1278 = vadd.f32 %v1133, %v1277
        %v1279 = vpop.f32.mrb[0].mxu0
        %1280 = vmatprep.mubr.f32.mxu0 %v638
        %1281 = vmatmul.mubr.f32.gmra.mrb[0].mxu0 %v637
        %v1282 = vpop.f32.mrb[0].mxu0
        %v1283 = vadd.f32 %v1138, %v1282
        %v1284 = vpop.f32.mrb[0].mxu0
        %1285 = vmatprep.mubr.f32.mxu0 %v644
        %1286 = vmatmul.mubr.f32.gmra.mrb[0].mxu0 %v643
        %v1287 = vpop.f32.mrb[0].mxu0
        %v1288 = vadd.f32 %v1143, %v1287
        %v1289 = vpop.f32.mrb[0].mxu0
        %1290 = vmatprep.mubr.f32.mxu0 %v650
        %1291 = vmatmul.mubr.f32.gmra.mrb[0].mxu0 %v649
        %v1292 = vpop.f32.mrb[0].mxu0
        %v1293 = vadd.f32 %v1148, %v1292
        %v1294 = vpop.f32.mrb[0].mxu0
        %1295 = vmatprep.mubr.f32.mxu0 %v656
        %1296 = vmatmul.mubr.f32.gmra.mrb[0].mxu0 %v655
        %v1297 = vpop.f32.mrb[0].mxu0
        %v1298 = vadd.f32 %v1153, %v1297
        %v1299 = vpop.f32.mrb[0].mxu0
        %1300 = vmatprep.mubr.f32.mxu0 %v662
        %1301 = vmatmul.mubr.f32.gmra.mrb[0].mxu0 %v661
        %v1302 = vpop.f32.mrb[0].mxu0
        %v1303 = vadd.f32 %v1158, %v1302
        %v1304 = vpop.f32.mrb[0].mxu0
        %1305 = vmatprep.mubr.f32.mxu0 %v668
        %1306 = vmatmul.mubr.f32.gmra.mrb[0].mxu0 %v667
        %v1307 = vpop.f32.mrb[0].mxu0
        %v1308 = vadd.f32 %v1163, %v1307
        %v1309 = vpop.f32.mrb[0].mxu0
        %1310 = vmatprep.mubr.f32.mxu0 %v674
        %1311 = vmatmul.mubr.f32.gmra.mrb[0].mxu0 %v673
        %v1312 = vpop.f32.mrb[0].mxu0
        %v1313 = vadd.f32 %v1168, %v1312
        %v1314 = vpop.f32.mrb[0].mxu0
        %1315 = vmatprep.mubr.f32.mxu0 %v680
        %1316 = vmatmul.mubr.f32.gmra.mrb[0].mxu0 %v679
        %v1317 = vpop.f32.mrb[0].mxu0
        %v1318 = vadd.f32 %v1173, %v1317
        %v1319 = vpop.f32.mrb[0].mxu0
        %1320 = vmatprep.mubr.f32.mxu0 %v686
        %1321 = vmatmul.mubr.f32.gmra.mrb[0].mxu0 %v685
        %v1322 = vpop.f32.mrb[0].mxu0
        %v1323 = vadd.f32 %v1178, %v1322
        %v1324 = vpop.f32.mrb[0].mxu0
        %1325 = vmatprep.mubr.f32.mxu0 %v692
        %1326 = vmatmul.mubr.f32.gmra.mrb[0].mxu0 %v691
        %v1327 = vpop.f32.mrb[0].mxu0
        %v1328 = vadd.f32 %v1183, %v1327
        %v1329 = vpop.f32.mrb[0].mxu0
        %1330 = vmatprep.mubr.f32.mxu0 %v698
        %1331 = vmatmul.mubr.f32.gmra.mrb[0].mxu0 %v697
        %v1332 = vpop.f32.mrb[0].mxu0
        %v1333 = vadd.f32 %v1188, %v1332
        %v1334 = vpop.f32.mrb[0].mxu0
        %1335 = vmatprep.mubr.f32.mxu0 %v704
        %1336 = vmatmul.mubr.f32.gmra.mrb[0].mxu0 %v703
        %v1337 = vpop.f32.mrb[0].mxu0
        %v1338 = vadd.f32 %v1193, %v1337
        %v1339 = vpop.f32.mrb[0].mxu0
        %1340 = vmatprep.mubr.f32.mxu0 %v710
        %1341 = vmatmul.mubr.f32.gmra.mrb[0].mxu0 %v709
        %v1342 = vpop.f32.mrb[0].mxu0
        %v1343 = vadd.f32 %v1198, %v1342
        %v1344 = vpop.f32.mrb[0].mxu0
        %1345 = vmatprep.mubr.f32.mxu0 %v716
        %1346 = vmatmul.mubr.f32.gmra.mrb[0].mxu0 %v715
        %v1347 = vpop.f32.mrb[0].mxu0
        %v1348 = vadd.f32 %v1203, %v1347
        %v1349 = vpop.f32.mrb[0].mxu0
        %1350 = vdwg.mxu0
        %v1351 = vld [vmem:[#allocation11] sm:$0xff]
        %v1352 = vld [vmem:[#allocation11 + $0x8] sm:$0xff]
        %v1353 = vld [vmem:[#allocation11 + $0x10] sm:$0xff]
        %v1354 = vld [vmem:[#allocation11 + $0x18] sm:$0xff]
        %v1355 = vld [vmem:[#allocation11 + $0x20] sm:$0xff]
        %v1356 = vld [vmem:[#allocation11 + $0x28] sm:$0xff]
        %v1357 = vld [vmem:[#allocation11 + $0x30] sm:$0xff]
        %v1358 = vld [vmem:[#allocation11 + $0x38] sm:$0xff]
        %v1359 = vld [vmem:[#allocation11 + $0x40] sm:$0xff]
        %v1360 = vld [vmem:[#allocation11 + $0x48] sm:$0xff]
        %v1361 = vld [vmem:[#allocation11 + $0x50] sm:$0xff]
        %v1362 = vld [vmem:[#allocation11 + $0x58] sm:$0xff]
        %v1363 = vld [vmem:[#allocation11 + $0x60] sm:$0xff]
        %v1364 = vld [vmem:[#allocation11 + $0x68] sm:$0xff]
        %v1365 = vld [vmem:[#allocation11 + $0x70] sm:$0xff]
        %v1366 = vld [vmem:[#allocation11 + $0x78] sm:$0xff]
        %v1367 = vld [vmem:[#allocation11 + $0x80] sm:$0xff]
        %v1368 = vld [vmem:[#allocation11 + $0x88] sm:$0xff]
        %v1369 = vld [vmem:[#allocation11 + $0x90] sm:$0xff]
        %v1370 = vld [vmem:[#allocation11 + $0x98] sm:$0xff]
        %v1371 = vld [vmem:[#allocation11 + $0xa0] sm:$0xff]
        %v1372 = vld [vmem:[#allocation11 + $0xa8] sm:$0xff]
        %v1373 = vld [vmem:[#allocation11 + $0xb0] sm:$0xff]
        %v1374 = vld [vmem:[#allocation11 + $0xb8] sm:$0xff]
        %v1375 = vld [vmem:[#allocation11 + $0xc0] sm:$0xff]
        %v1376 = vld [vmem:[#allocation11 + $0xc8] sm:$0xff]
        %v1377 = vld [vmem:[#allocation11 + $0xd0] sm:$0xff]
        %v1378 = vld [vmem:[#allocation11 + $0xd8] sm:$0xff]
        %v1379 = vld [vmem:[#allocation11 + $0xe0] sm:$0xff]
        %v1380 = vld [vmem:[#allocation11 + $0xe8] sm:$0xff]
        %v1381 = vld [vmem:[#allocation11 + $0xf0] sm:$0xff]
        %v1382 = vld [vmem:[#allocation11 + $0xf8] sm:$0xff]
        %v1383 = vld [vmem:[#allocation11 + $0x100] sm:$0xff]
        %v1384 = vld [vmem:[#allocation11 + $0x108] sm:$0xff]
        %v1385 = vld [vmem:[#allocation11 + $0x110] sm:$0xff]
        %v1386 = vld [vmem:[#allocation11 + $0x118] sm:$0xff]
        %v1387 = vld [vmem:[#allocation11 + $0x120] sm:$0xff]
        %v1388 = vld [vmem:[#allocation11 + $0x128] sm:$0xff]
        %v1389 = vld [vmem:[#allocation11 + $0x130] sm:$0xff]
        %v1390 = vld [vmem:[#allocation11 + $0x138] sm:$0xff]
        %v1391 = vld [vmem:[#allocation11 + $0x140] sm:$0xff]
        %v1392 = vld [vmem:[#allocation11 + $0x148] sm:$0xff]
        %v1393 = vld [vmem:[#allocation11 + $0x150] sm:$0xff]
        %v1394 = vld [vmem:[#allocation11 + $0x158] sm:$0xff]
        %v1395 = vld [vmem:[#allocation11 + $0x160] sm:$0xff]
        %v1396 = vld [vmem:[#allocation11 + $0x168] sm:$0xff]
        %v1397 = vld [vmem:[#allocation11 + $0x170] sm:$0xff]
        %v1398 = vld [vmem:[#allocation11 + $0x178] sm:$0xff]
        %v1399 = vld [vmem:[#allocation11 + $0x180] sm:$0xff]
        %v1400 = vld [vmem:[#allocation11 + $0x188] sm:$0xff]
        %v1401 = vld [vmem:[#allocation11 + $0x190] sm:$0xff]
        %v1402 = vld [vmem:[#allocation11 + $0x198] sm:$0xff]
        %v1403 = vld [vmem:[#allocation11 + $0x1a0] sm:$0xff]
        %v1404 = vld [vmem:[#allocation11 + $0x1a8] sm:$0xff]
        %v1405 = vld [vmem:[#allocation11 + $0x1b0] sm:$0xff]
        %v1406 = vld [vmem:[#allocation11 + $0x1b8] sm:$0xff]
        %v1407 = vld [vmem:[#allocation11 + $0x1c0] sm:$0xff]
        %v1408 = vld [vmem:[#allocation11 + $0x1c8] sm:$0xff]
        %v1409 = vld [vmem:[#allocation11 + $0x1d0] sm:$0xff]
        %v1410 = vld [vmem:[#allocation11 + $0x1d8] sm:$0xff]
        %v1411 = vld [vmem:[#allocation11 + $0x1e0] sm:$0xff]
        %v1412 = vld [vmem:[#allocation11 + $0x1e8] sm:$0xff]
        %v1413 = vld [vmem:[#allocation11 + $0x1f0] sm:$0xff]
        %v1414 = vld [vmem:[#allocation11 + $0x1f8] sm:$0xff]
        %v1415 = vld [vmem:[#allocation11 + $0x200] sm:$0xff]
        %v1416 = vld [vmem:[#allocation11 + $0x208] sm:$0xff]
        %v1417 = vld [vmem:[#allocation11 + $0x210] sm:$0xff]
        %v1418 = vld [vmem:[#allocation11 + $0x218] sm:$0xff]
        %v1419 = vld [vmem:[#allocation11 + $0x220] sm:$0xff]
        %v1420 = vld [vmem:[#allocation11 + $0x228] sm:$0xff]
        %v1421 = vld [vmem:[#allocation11 + $0x230] sm:$0xff]
        %v1422 = vld [vmem:[#allocation11 + $0x238] sm:$0xff]
        %v1423 = vld [vmem:[#allocation11 + $0x240] sm:$0xff]
        %v1424 = vld [vmem:[#allocation11 + $0x248] sm:$0xff]
        %v1425 = vld [vmem:[#allocation11 + $0x250] sm:$0xff]
        %v1426 = vld [vmem:[#allocation11 + $0x258] sm:$0xff]
        %v1427 = vld [vmem:[#allocation11 + $0x260] sm:$0xff]
        %v1428 = vld [vmem:[#allocation11 + $0x268] sm:$0xff]
        %v1429 = vld [vmem:[#allocation11 + $0x270] sm:$0xff]
        %v1430 = vld [vmem:[#allocation11 + $0x278] sm:$0xff]
        %v1431 = vld [vmem:[#allocation11 + $0x280] sm:$0xff]
        %v1432 = vld [vmem:[#allocation11 + $0x288] sm:$0xff]
        %v1433 = vld [vmem:[#allocation11 + $0x290] sm:$0xff]
        %v1434 = vld [vmem:[#allocation11 + $0x298] sm:$0xff]
        %v1435 = vld [vmem:[#allocation11 + $0x2a0] sm:$0xff]
        %v1436 = vld [vmem:[#allocation11 + $0x2a8] sm:$0xff]
        %v1437 = vld [vmem:[#allocation11 + $0x2b0] sm:$0xff]
        %v1438 = vld [vmem:[#allocation11 + $0x2b8] sm:$0xff]
        %v1439 = vld [vmem:[#allocation11 + $0x2c0] sm:$0xff]
        %v1440 = vld [vmem:[#allocation11 + $0x2c8] sm:$0xff]
        %v1441 = vld [vmem:[#allocation11 + $0x2d0] sm:$0xff]
        %v1442 = vld [vmem:[#allocation11 + $0x2d8] sm:$0xff]
        %v1443 = vld [vmem:[#allocation11 + $0x2e0] sm:$0xff]
        %v1444 = vld [vmem:[#allocation11 + $0x2e8] sm:$0xff]
        %v1445 = vld [vmem:[#allocation11 + $0x2f0] sm:$0xff]
        %v1446 = vld [vmem:[#allocation11 + $0x2f8] sm:$0xff]
        %v1447 = vld [vmem:[%s8] sm:$0x1]
        %v1449 = vlaneseq
        %v1450 = vshrl.u32 %v1449, 7
        %v1451 = vsub.s32 0, %v1450
        %v1452 = vrot.slane %v1447, %v1451
        %1454 = vmatprep.subr.mxu0 0.0
        %1455 = vmatpush1.msra.mxu0 %v1351
        %1456 = vmatprep.subr.mxu0 0.0
        %1457 = vmatpush1.msra.mxu0 %v1352
        %1458 = vmatprep.subr.mxu0 0.0
        %1459 = vmatpush1.msra.mxu0 %v1353
        %1460 = vmatprep.subr.mxu0 0.0
        %1461 = vmatpush1.msra.mxu0 %v1354
        %1462 = vmatprep.subr.mxu0 0.0
        %1463 = vmatpush1.msra.mxu0 %v1355
        %1464 = vmatprep.subr.mxu0 0.0
        %1465 = vmatpush1.msra.mxu0 %v1356
        %1466 = vmatprep.subr.mxu0 0.0
        %1467 = vmatpush1.msra.mxu0 %v1357
        %1468 = vmatprep.subr.mxu0 0.0
        %1469 = vmatpush1.msra.mxu0 %v1358
        %1470 = vmatprep.subr.mxu0 0.0
        %1471 = vmatpush1.msra.mxu0 %v1359
        %1472 = vmatprep.subr.mxu0 0.0
        %1473 = vmatpush1.msra.mxu0 %v1360
        %1474 = vmatprep.subr.mxu0 0.0
        %1475 = vmatpush1.msra.mxu0 %v1361
        %1476 = vmatprep.subr.mxu0 0.0
        %1477 = vmatpush1.msra.mxu0 %v1362
        %1478 = vmatprep.subr.mxu0 0.0
        %1479 = vmatpush1.msra.mxu0 %v1363
        %1480 = vmatprep.subr.mxu0 0.0
        %1481 = vmatpush1.msra.mxu0 %v1364
        %1482 = vmatprep.subr.mxu0 0.0
        %1483 = vmatpush1.msra.mxu0 %v1365
        %1484 = vmatprep.subr.mxu0 0.0
        %1485 = vmatpush1.msra.mxu0 %v1366
        %1486 = vmatprep.subr.mxu0 0.0
        %1487 = vmatpush1.msra.mxu0 %v1367
        %1488 = vmatprep.subr.mxu0 0.0
        %1489 = vmatpush1.msra.mxu0 %v1368
        %1490 = vmatprep.subr.mxu0 0.0
        %1491 = vmatpush1.msra.mxu0 %v1369
        %1492 = vmatprep.subr.mxu0 0.0
        %1493 = vmatpush1.msra.mxu0 %v1370
        %1494 = vmatprep.subr.mxu0 0.0
        %1495 = vmatpush1.msra.mxu0 %v1371
        %1496 = vmatprep.subr.mxu0 0.0
        %1497 = vmatpush1.msra.mxu0 %v1372
        %1498 = vmatprep.subr.mxu0 0.0
        %1499 = vmatpush1.msra.mxu0 %v1373
        %1500 = vmatprep.subr.mxu0 0.0
        %1501 = vmatpush1.msra.mxu0 %v1374
        %1502 = vmatprep.subr.mxu0 0.0
        %1503 = vmatpush1.msra.mxu0 %v1375
        %1504 = vmatprep.subr.mxu0 0.0
        %1505 = vmatpush1.msra.mxu0 %v1376
        %1506 = vmatprep.subr.mxu0 0.0
        %1507 = vmatpush1.msra.mxu0 %v1377
        %1508 = vmatprep.subr.mxu0 0.0
        %1509 = vmatpush1.msra.mxu0 %v1378
        %1510 = vmatprep.subr.mxu0 0.0
        %1511 = vmatpush1.msra.mxu0 %v1379
        %1512 = vmatprep.subr.mxu0 0.0
        %1513 = vmatpush1.msra.mxu0 %v1380
        %1514 = vmatprep.subr.mxu0 0.0
        %1515 = vmatpush1.msra.mxu0 %v1381
        %1516 = vmatprep.subr.mxu0 0.0
        %1517 = vmatpush1.msra.mxu0 %v1382
        %1518 = vmatprep.mubr.f32.mxu0 %v718
        %1519 = vmatmul.mubr.f32.gmra.mrb[0].mxu0 %v717
        %v1520 = vpop.f32.mrb[0].mxu0
        %v1521 = vadd.f32 %v1452, %v1520
        %v1522 = vpop.f32.mrb[0].mxu0
        %1523 = vmatprep.mubr.f32.mxu0 %v724
        %1524 = vmatmul.mubr.f32.gmra.mrb[0].mxu0 %v723
        %v1525 = vpop.f32.mrb[0].mxu0
        %v1526 = vadd.f32 %v1452, %v1525
        %v1527 = vpop.f32.mrb[0].mxu0
        %1528 = vmatprep.mubr.f32.mxu0 %v730
        %1529 = vmatmul.mubr.f32.gmra.mrb[0].mxu0 %v729
        %v1530 = vpop.f32.mrb[0].mxu0
        %v1531 = vadd.f32 %v1452, %v1530
        %v1532 = vpop.f32.mrb[0].mxu0
        %1533 = vmatprep.mubr.f32.mxu0 %v736
        %1534 = vmatmul.mubr.f32.gmra.mrb[0].mxu0 %v735
        %v1535 = vpop.f32.mrb[0].mxu0
        %v1536 = vadd.f32 %v1452, %v1535
        %v1537 = vpop.f32.mrb[0].mxu0
        %1538 = vmatprep.mubr.f32.mxu0 %v742
        %1539 = vmatmul.mubr.f32.gmra.mrb[0].mxu0 %v741
        %v1540 = vpop.f32.mrb[0].mxu0
        %v1541 = vadd.f32 %v1452, %v1540
        %v1542 = vpop.f32.mrb[0].mxu0
        %1543 = vmatprep.mubr.f32.mxu0 %v748
        %1544 = vmatmul.mubr.f32.gmra.mrb[0].mxu0 %v747
        %v1545 = vpop.f32.mrb[0].mxu0
        %v1546 = vadd.f32 %v1452, %v1545
        %v1547 = vpop.f32.mrb[0].mxu0
        %1548 = vmatprep.mubr.f32.mxu0 %v754
        %1549 = vmatmul.mubr.f32.gmra.mrb[0].mxu0 %v753
        %v1550 = vpop.f32.mrb[0].mxu0
        %v1551 = vadd.f32 %v1452, %v1550
        %v1552 = vpop.f32.mrb[0].mxu0
        %1553 = vmatprep.mubr.f32.mxu0 %v760
        %1554 = vmatmul.mubr.f32.gmra.mrb[0].mxu0 %v759
        %v1555 = vpop.f32.mrb[0].mxu0
        %v1556 = vadd.f32 %v1452, %v1555
        %v1557 = vpop.f32.mrb[0].mxu0
        %1558 = vmatprep.mubr.f32.mxu0 %v766
        %1559 = vmatmul.mubr.f32.gmra.mrb[0].mxu0 %v765
        %v1560 = vpop.f32.mrb[0].mxu0
        %v1561 = vadd.f32 %v1452, %v1560
        %v1562 = vpop.f32.mrb[0].mxu0
        %1563 = vmatprep.mubr.f32.mxu0 %v772
        %1564 = vmatmul.mubr.f32.gmra.mrb[0].mxu0 %v771
        %v1565 = vpop.f32.mrb[0].mxu0
        %v1566 = vadd.f32 %v1452, %v1565
        %v1567 = vpop.f32.mrb[0].mxu0
        %1568 = vmatprep.mubr.f32.mxu0 %v778
        %1569 = vmatmul.mubr.f32.gmra.mrb[0].mxu0 %v777
        %v1570 = vpop.f32.mrb[0].mxu0
        %v1571 = vadd.f32 %v1452, %v1570
        %v1572 = vpop.f32.mrb[0].mxu0
        %1573 = vmatprep.mubr.f32.mxu0 %v784
        %1574 = vmatmul.mubr.f32.gmra.mrb[0].mxu0 %v783
        %v1575 = vpop.f32.mrb[0].mxu0
        %v1576 = vadd.f32 %v1452, %v1575
        %v1577 = vpop.f32.mrb[0].mxu0
        %1578 = vmatprep.mubr.f32.mxu0 %v790
        %1579 = vmatmul.mubr.f32.gmra.mrb[0].mxu0 %v789
        %v1580 = vpop.f32.mrb[0].mxu0
        %v1581 = vadd.f32 %v1452, %v1580
        %v1582 = vpop.f32.mrb[0].mxu0
        %1583 = vmatprep.mubr.f32.mxu0 %v796
        %1584 = vmatmul.mubr.f32.gmra.mrb[0].mxu0 %v795
        %v1585 = vpop.f32.mrb[0].mxu0
        %v1586 = vadd.f32 %v1452, %v1585
        %v1587 = vpop.f32.mrb[0].mxu0
        %1588 = vmatprep.mubr.f32.mxu0 %v802
        %1589 = vmatmul.mubr.f32.gmra.mrb[0].mxu0 %v801
        %v1590 = vpop.f32.mrb[0].mxu0
        %v1591 = vadd.f32 %v1452, %v1590
        %v1592 = vpop.f32.mrb[0].mxu0
        %1593 = vmatprep.mubr.f32.mxu0 %v808
        %1594 = vmatmul.mubr.f32.gmra.mrb[0].mxu0 %v807
        %v1595 = vpop.f32.mrb[0].mxu0
        %v1596 = vadd.f32 %v1452, %v1595
        %v1597 = vpop.f32.mrb[0].mxu0
        %1598 = vdwg.mxu0
        %1599 = vmatprep.subr.mxu0 0.0
        %1600 = vmatpush1.msra.mxu0 %v1383
        %1601 = vmatprep.subr.mxu0 0.0
        %1602 = vmatpush1.msra.mxu0 %v1384
        %1603 = vmatprep.subr.mxu0 0.0
        %1604 = vmatpush1.msra.mxu0 %v1385
        %1605 = vmatprep.subr.mxu0 0.0
        %1606 = vmatpush1.msra.mxu0 %v1386
        %1607 = vmatprep.subr.mxu0 0.0
        %1608 = vmatpush1.msra.mxu0 %v1387
        %1609 = vmatprep.subr.mxu0 0.0
        %1610 = vmatpush1.msra.mxu0 %v1388
        %1611 = vmatprep.subr.mxu0 0.0
        %1612 = vmatpush1.msra.mxu0 %v1389
        %1613 = vmatprep.subr.mxu0 0.0
        %1614 = vmatpush1.msra.mxu0 %v1390
        %1615 = vmatprep.subr.mxu0 0.0
        %1616 = vmatpush1.msra.mxu0 %v1391
        %1617 = vmatprep.subr.mxu0 0.0
        %1618 = vmatpush1.msra.mxu0 %v1392
        %1619 = vmatprep.subr.mxu0 0.0
        %1620 = vmatpush1.msra.mxu0 %v1393
        %1621 = vmatprep.subr.mxu0 0.0
        %1622 = vmatpush1.msra.mxu0 %v1394
        %1623 = vmatprep.subr.mxu0 0.0
        %1624 = vmatpush1.msra.mxu0 %v1395
        %1625 = vmatprep.subr.mxu0 0.0
        %1626 = vmatpush1.msra.mxu0 %v1396
        %1627 = vmatprep.subr.mxu0 0.0
        %1628 = vmatpush1.msra.mxu0 %v1397
        %1629 = vmatprep.subr.mxu0 0.0
        %1630 = vmatpush1.msra.mxu0 %v1398
        %1631 = vmatprep.subr.mxu0 0.0
        %1632 = vmatpush1.msra.mxu0 %v1399
        %1633 = vmatprep.subr.mxu0 0.0
        %1634 = vmatpush1.msra.mxu0 %v1400
        %1635 = vmatprep.subr.mxu0 0.0
        %1636 = vmatpush1.msra.mxu0 %v1401
        %1637 = vmatprep.subr.mxu0 0.0
        %1638 = vmatpush1.msra.mxu0 %v1402
        %1639 = vmatprep.subr.mxu0 0.0
        %1640 = vmatpush1.msra.mxu0 %v1403
        %1641 = vmatprep.subr.mxu0 0.0
        %1642 = vmatpush1.msra.mxu0 %v1404
        %1643 = vmatprep.subr.mxu0 0.0
        %1644 = vmatpush1.msra.mxu0 %v1405
        %1645 = vmatprep.subr.mxu0 0.0
        %1646 = vmatpush1.msra.mxu0 %v1406
        %1647 = vmatprep.subr.mxu0 0.0
        %1648 = vmatpush1.msra.mxu0 %v1407
        %1649 = vmatprep.subr.mxu0 0.0
        %1650 = vmatpush1.msra.mxu0 %v1408
        %1651 = vmatprep.subr.mxu0 0.0
        %1652 = vmatpush1.msra.mxu0 %v1409
        %1653 = vmatprep.subr.mxu0 0.0
        %1654 = vmatpush1.msra.mxu0 %v1410
        %1655 = vmatprep.subr.mxu0 0.0
        %1656 = vmatpush1.msra.mxu0 %v1411
        %1657 = vmatprep.subr.mxu0 0.0
        %1658 = vmatpush1.msra.mxu0 %v1412
        %1659 = vmatprep.subr.mxu0 0.0
        %1660 = vmatpush1.msra.mxu0 %v1413
        %1661 = vmatprep.subr.mxu0 0.0
        %1662 = vmatpush1.msra.mxu0 %v1414
        %1663 = vmatprep.mubr.f32.mxu0 %v720
        %1664 = vmatmul.mubr.f32.gmra.mrb[0].mxu0 %v719
        %v1665 = vpop.f32.mrb[0].mxu0
        %v1666 = vadd.f32 %v1521, %v1665
        %v1667 = vpop.f32.mrb[0].mxu0
        %1668 = vmatprep.mubr.f32.mxu0 %v726
        %1669 = vmatmul.mubr.f32.gmra.mrb[0].mxu0 %v725
        %v1670 = vpop.f32.mrb[0].mxu0
        %v1671 = vadd.f32 %v1526, %v1670
        %v1672 = vpop.f32.mrb[0].mxu0
        %1673 = vmatprep.mubr.f32.mxu0 %v732
        %1674 = vmatmul.mubr.f32.gmra.mrb[0].mxu0 %v731
        %v1675 = vpop.f32.mrb[0].mxu0
        %v1676 = vadd.f32 %v1531, %v1675
        %v1677 = vpop.f32.mrb[0].mxu0
        %1678 = vmatprep.mubr.f32.mxu0 %v738
        %1679 = vmatmul.mubr.f32.gmra.mrb[0].mxu0 %v737
        %v1680 = vpop.f32.mrb[0].mxu0
        %v1681 = vadd.f32 %v1536, %v1680
        %v1682 = vpop.f32.mrb[0].mxu0
        %1683 = vmatprep.mubr.f32.mxu0 %v744
        %1684 = vmatmul.mubr.f32.gmra.mrb[0].mxu0 %v743
        %v1685 = vpop.f32.mrb[0].mxu0
        %v1686 = vadd.f32 %v1541, %v1685
        %v1687 = vpop.f32.mrb[0].mxu0
        %1688 = vmatprep.mubr.f32.mxu0 %v750
        %1689 = vmatmul.mubr.f32.gmra.mrb[0].mxu0 %v749
        %v1690 = vpop.f32.mrb[0].mxu0
        %v1691 = vadd.f32 %v1546, %v1690
        %v1692 = vpop.f32.mrb[0].mxu0
        %1693 = vmatprep.mubr.f32.mxu0 %v756
        %1694 = vmatmul.mubr.f32.gmra.mrb[0].mxu0 %v755
        %v1695 = vpop.f32.mrb[0].mxu0
        %v1696 = vadd.f32 %v1551, %v1695
        %v1697 = vpop.f32.mrb[0].mxu0
        %1698 = vmatprep.mubr.f32.mxu0 %v762
        %1699 = vmatmul.mubr.f32.gmra.mrb[0].mxu0 %v761
        %v1700 = vpop.f32.mrb[0].mxu0
        %v1701 = vadd.f32 %v1556, %v1700
        %v1702 = vpop.f32.mrb[0].mxu0
        %1703 = vmatprep.mubr.f32.mxu0 %v768
        %1704 = vmatmul.mubr.f32.gmra.mrb[0].mxu0 %v767
        %v1705 = vpop.f32.mrb[0].mxu0
        %v1706 = vadd.f32 %v1561, %v1705
        %v1707 = vpop.f32.mrb[0].mxu0
        %1708 = vmatprep.mubr.f32.mxu0 %v774
        %1709 = vmatmul.mubr.f32.gmra.mrb[0].mxu0 %v773
        %v1710 = vpop.f32.mrb[0].mxu0
        %v1711 = vadd.f32 %v1566, %v1710
        %v1712 = vpop.f32.mrb[0].mxu0
        %1713 = vmatprep.mubr.f32.mxu0 %v780
        %1714 = vmatmul.mubr.f32.gmra.mrb[0].mxu0 %v779
        %v1715 = vpop.f32.mrb[0].mxu0
        %v1716 = vadd.f32 %v1571, %v1715
        %v1717 = vpop.f32.mrb[0].mxu0
        %1718 = vmatprep.mubr.f32.mxu0 %v786
        %1719 = vmatmul.mubr.f32.gmra.mrb[0].mxu0 %v785
        %v1720 = vpop.f32.mrb[0].mxu0
        %v1721 = vadd.f32 %v1576, %v1720
        %v1722 = vpop.f32.mrb[0].mxu0
        %1723 = vmatprep.mubr.f32.mxu0 %v792
        %1724 = vmatmul.mubr.f32.gmra.mrb[0].mxu0 %v791
        %v1725 = vpop.f32.mrb[0].mxu0
        %v1726 = vadd.f32 %v1581, %v1725
        %v1727 = vpop.f32.mrb[0].mxu0
        %1728 = vmatprep.mubr.f32.mxu0 %v798
        %1729 = vmatmul.mubr.f32.gmra.mrb[0].mxu0 %v797
        %v1730 = vpop.f32.mrb[0].mxu0
        %v1731 = vadd.f32 %v1586, %v1730
        %v1732 = vpop.f32.mrb[0].mxu0
        %1733 = vmatprep.mubr.f32.mxu0 %v804
        %1734 = vmatmul.mubr.f32.gmra.mrb[0].mxu0 %v803
        %v1735 = vpop.f32.mrb[0].mxu0
        %v1736 = vadd.f32 %v1591, %v1735
        %v1737 = vpop.f32.mrb[0].mxu0
        %1738 = vmatprep.mubr.f32.mxu0 %v810
        %1739 = vmatmul.mubr.f32.gmra.mrb[0].mxu0 %v809
        %v1740 = vpop.f32.mrb[0].mxu0
        %v1741 = vadd.f32 %v1596, %v1740
        %v1742 = vpop.f32.mrb[0].mxu0
        %1743 = vdwg.mxu0
        %1744 = vmatprep.subr.mxu0 0.0
        %1745 = vmatpush1.msra.mxu0 %v1415
        %1746 = vmatprep.subr.mxu0 0.0
        %1747 = vmatpush1.msra.mxu0 %v1416
        %1748 = vmatprep.subr.mxu0 0.0
        %1749 = vmatpush1.msra.mxu0 %v1417
        %1750 = vmatprep.subr.mxu0 0.0
        %1751 = vmatpush1.msra.mxu0 %v1418
        %1752 = vmatprep.subr.mxu0 0.0
        %1753 = vmatpush1.msra.mxu0 %v1419
        %1754 = vmatprep.subr.mxu0 0.0
        %1755 = vmatpush1.msra.mxu0 %v1420
        %1756 = vmatprep.subr.mxu0 0.0
        %1757 = vmatpush1.msra.mxu0 %v1421
        %1758 = vmatprep.subr.mxu0 0.0
        %1759 = vmatpush1.msra.mxu0 %v1422
        %1760 = vmatprep.subr.mxu0 0.0
        %1761 = vmatpush1.msra.mxu0 %v1423
        %1762 = vmatprep.subr.mxu0 0.0
        %1763 = vmatpush1.msra.mxu0 %v1424
        %1764 = vmatprep.subr.mxu0 0.0
        %1765 = vmatpush1.msra.mxu0 %v1425
        %1766 = vmatprep.subr.mxu0 0.0
        %1767 = vmatpush1.msra.mxu0 %v1426
        %1768 = vmatprep.subr.mxu0 0.0
        %1769 = vmatpush1.msra.mxu0 %v1427
        %1770 = vmatprep.subr.mxu0 0.0
        %1771 = vmatpush1.msra.mxu0 %v1428
        %1772 = vmatprep.subr.mxu0 0.0
        %1773 = vmatpush1.msra.mxu0 %v1429
        %1774 = vmatprep.subr.mxu0 0.0
        %1775 = vmatpush1.msra.mxu0 %v1430
        %1776 = vmatprep.subr.mxu0 0.0
        %1777 = vmatpush1.msra.mxu0 %v1431
        %1778 = vmatprep.subr.mxu0 0.0
        %1779 = vmatpush1.msra.mxu0 %v1432
        %1780 = vmatprep.subr.mxu0 0.0
        %1781 = vmatpush1.msra.mxu0 %v1433
        %1782 = vmatprep.subr.mxu0 0.0
        %1783 = vmatpush1.msra.mxu0 %v1434
        %1784 = vmatprep.subr.mxu0 0.0
        %1785 = vmatpush1.msra.mxu0 %v1435
        %1786 = vmatprep.subr.mxu0 0.0
        %1787 = vmatpush1.msra.mxu0 %v1436
        %1788 = vmatprep.subr.mxu0 0.0
        %1789 = vmatpush1.msra.mxu0 %v1437
        %1790 = vmatprep.subr.mxu0 0.0
        %1791 = vmatpush1.msra.mxu0 %v1438
        %1792 = vmatprep.subr.mxu0 0.0
        %1793 = vmatpush1.msra.mxu0 %v1439
        %1794 = vmatprep.subr.mxu0 0.0
        %1795 = vmatpush1.msra.mxu0 %v1440
        %1796 = vmatprep.subr.mxu0 0.0
        %1797 = vmatpush1.msra.mxu0 %v1441
        %1798 = vmatprep.subr.mxu0 0.0
        %1799 = vmatpush1.msra.mxu0 %v1442
        %1800 = vmatprep.subr.mxu0 0.0
        %1801 = vmatpush1.msra.mxu0 %v1443
        %1802 = vmatprep.subr.mxu0 0.0
        %1803 = vmatpush1.msra.mxu0 %v1444
        %1804 = vmatprep.subr.mxu0 0.0
        %1805 = vmatpush1.msra.mxu0 %v1445
        %1806 = vmatprep.subr.mxu0 0.0
        %1807 = vmatpush1.msra.mxu0 %v1446
        %1808 = vmatprep.mubr.f32.mxu0 %v722
        %1809 = vmatmul.mubr.f32.gmra.mrb[0].mxu0 %v721
        %v1810 = vpop.f32.mrb[0].mxu0
        %v1811 = vadd.f32 %v1666, %v1810
        %v1812 = vpop.f32.mrb[0].mxu0
        %1813 = vmatprep.mubr.f32.mxu0 %v728
        %1814 = vmatmul.mubr.f32.gmra.mrb[0].mxu0 %v727
        %v1815 = vpop.f32.mrb[0].mxu0
        %v1816 = vadd.f32 %v1671, %v1815
        %v1817 = vpop.f32.mrb[0].mxu0
        %1818 = vmatprep.mubr.f32.mxu0 %v734
        %1819 = vmatmul.mubr.f32.gmra.mrb[0].mxu0 %v733
        %v1820 = vpop.f32.mrb[0].mxu0
        %v1821 = vadd.f32 %v1676, %v1820
        %v1822 = vpop.f32.mrb[0].mxu0
        %1823 = vmatprep.mubr.f32.mxu0 %v740
        %1824 = vmatmul.mubr.f32.gmra.mrb[0].mxu0 %v739
        %v1825 = vpop.f32.mrb[0].mxu0
        %v1826 = vadd.f32 %v1681, %v1825
        %v1827 = vpop.f32.mrb[0].mxu0
        %1828 = vmatprep.mubr.f32.mxu0 %v746
        %1829 = vmatmul.mubr.f32.gmra.mrb[0].mxu0 %v745
        %v1830 = vpop.f32.mrb[0].mxu0
        %v1831 = vadd.f32 %v1686, %v1830
        %v1832 = vpop.f32.mrb[0].mxu0
        %1833 = vmatprep.mubr.f32.mxu0 %v752
        %1834 = vmatmul.mubr.f32.gmra.mrb[0].mxu0 %v751
        %v1835 = vpop.f32.mrb[0].mxu0
        %v1836 = vadd.f32 %v1691, %v1835
        %v1837 = vpop.f32.mrb[0].mxu0
        %1838 = vmatprep.mubr.f32.mxu0 %v758
        %1839 = vmatmul.mubr.f32.gmra.mrb[0].mxu0 %v757
        %v1840 = vpop.f32.mrb[0].mxu0
        %v1841 = vadd.f32 %v1696, %v1840
        %v1842 = vpop.f32.mrb[0].mxu0
        %1843 = vmatprep.mubr.f32.mxu0 %v764
        %1844 = vmatmul.mubr.f32.gmra.mrb[0].mxu0 %v763
        %v1845 = vpop.f32.mrb[0].mxu0
        %v1846 = vadd.f32 %v1701, %v1845
        %v1847 = vpop.f32.mrb[0].mxu0
        %1848 = vmatprep.mubr.f32.mxu0 %v770
        %1849 = vmatmul.mubr.f32.gmra.mrb[0].mxu0 %v769
        %v1850 = vpop.f32.mrb[0].mxu0
        %v1851 = vadd.f32 %v1706, %v1850
        %v1852 = vpop.f32.mrb[0].mxu0
        %1853 = vmatprep.mubr.f32.mxu0 %v776
        %1854 = vmatmul.mubr.f32.gmra.mrb[0].mxu0 %v775
        %v1855 = vpop.f32.mrb[0].mxu0
        %v1856 = vadd.f32 %v1711, %v1855
        %v1857 = vpop.f32.mrb[0].mxu0
        %1858 = vmatprep.mubr.f32.mxu0 %v782
        %1859 = vmatmul.mubr.f32.gmra.mrb[0].mxu0 %v781
        %v1860 = vpop.f32.mrb[0].mxu0
        %v1861 = vadd.f32 %v1716, %v1860
        %v1862 = vpop.f32.mrb[0].mxu0
        %1863 = vmatprep.mubr.f32.mxu0 %v788
        %1864 = vmatmul.mubr.f32.gmra.mrb[0].mxu0 %v787
        %v1865 = vpop.f32.mrb[0].mxu0
        %v1866 = vadd.f32 %v1721, %v1865
        %v1867 = vpop.f32.mrb[0].mxu0
        %1868 = vmatprep.mubr.f32.mxu0 %v794
        %1869 = vmatmul.mubr.f32.gmra.mrb[0].mxu0 %v793
        %v1870 = vpop.f32.mrb[0].mxu0
        %v1871 = vadd.f32 %v1726, %v1870
        %v1872 = vpop.f32.mrb[0].mxu0
        %1873 = vmatprep.mubr.f32.mxu0 %v800
        %1874 = vmatmul.mubr.f32.gmra.mrb[0].mxu0 %v799
        %v1875 = vpop.f32.mrb[0].mxu0
        %v1876 = vadd.f32 %v1731, %v1875
        %v1877 = vpop.f32.mrb[0].mxu0
        %1878 = vmatprep.mubr.f32.mxu0 %v806
        %1879 = vmatmul.mubr.f32.gmra.mrb[0].mxu0 %v805
        %v1880 = vpop.f32.mrb[0].mxu0
        %v1881 = vadd.f32 %v1736, %v1880
        %v1882 = vpop.f32.mrb[0].mxu0
        %1883 = vmatprep.mubr.f32.mxu0 %v812
        %1884 = vmatmul.mubr.f32.gmra.mrb[0].mxu0 %v811
        %v1885 = vpop.f32.mrb[0].mxu0
        %v1886 = vadd.f32 %v1741, %v1885
        %v1887 = vpop.f32.mrb[0].mxu0
        %1888 = vdwg.mxu0
        %1889 = vxpose.xlu0.b32.start [1/16] %v1273, 128
        %1890 = vxpose.xlu0.b32.cont [2/16] %v1278, 128
        %1891 = vxpose.xlu0.b32.cont [3/16] %v1283, 128
        %1892 = vxpose.xlu0.b32.cont [4/16] %v1288, 128
        %1893 = vxpose.xlu0.b32.cont [5/16] %v1293, 128
        %1894 = vxpose.xlu0.b32.cont [6/16] %v1298, 128
        %1895 = vxpose.xlu0.b32.cont [7/16] %v1303, 128
        %1896 = vxpose.xlu0.b32.cont [8/16] %v1308, 128
        %1897 = vxpose.xlu0.b32.cont [9/16] %v1313, 128
        %1898 = vxpose.xlu0.b32.cont [10/16] %v1318, 128
        %1899 = vxpose.xlu0.b32.cont [11/16] %v1323, 128
        %1900 = vxpose.xlu0.b32.cont [12/16] %v1328, 128
        %1901 = vxpose.xlu0.b32.cont [13/16] %v1333, 128
        %1902 = vxpose.xlu0.b32.cont [14/16] %v1338, 128
        %1903 = vxpose.xlu0.b32.cont [15/16] %v1343, 128
        %1904 = vxpose.xlu0.b32.end [16/16] %v1348, 128
        %v1905 = vpop.trf.xlu0
        %v1906 = vpop.trf.xlu0
        %v1907 = vpop.trf.xlu0
        %v1908 = vpop.trf.xlu0
        %v1909 = vpop.trf.xlu0
        %v1910 = vpop.trf.xlu0
        %v1911 = vpop.trf.xlu0
        %v1912 = vpop.trf.xlu0
        %v1913 = vpop.trf.xlu0
        %v1914 = vpop.trf.xlu0
        %v1915 = vpop.trf.xlu0
        %v1916 = vpop.trf.xlu0
        %v1917 = vpop.trf.xlu0
        %v1918 = vpop.trf.xlu0
        %v1919 = vpop.trf.xlu0
        %v1920 = vpop.trf.xlu0
        %1921 = vxpose.xlu0.b32.start [1/16] %v1811, 128
        %1922 = vxpose.xlu0.b32.cont [2/16] %v1816, 128
        %1923 = vxpose.xlu0.b32.cont [3/16] %v1821, 128
        %1924 = vxpose.xlu0.b32.cont [4/16] %v1826, 128
        %1925 = vxpose.xlu0.b32.cont [5/16] %v1831, 128
        %1926 = vxpose.xlu0.b32.cont [6/16] %v1836, 128
        %1927 = vxpose.xlu0.b32.cont [7/16] %v1841, 128
        %1928 = vxpose.xlu0.b32.cont [8/16] %v1846, 128
        %1929 = vxpose.xlu0.b32.cont [9/16] %v1851, 128
        %1930 = vxpose.xlu0.b32.cont [10/16] %v1856, 128
        %1931 = vxpose.xlu0.b32.cont [11/16] %v1861, 128
        %1932 = vxpose.xlu0.b32.cont [12/16] %v1866, 128
        %1933 = vxpose.xlu0.b32.cont [13/16] %v1871, 128
        %1934 = vxpose.xlu0.b32.cont [14/16] %v1876, 128
        %1935 = vxpose.xlu0.b32.cont [15/16] %v1881, 128
        %1936 = vxpose.xlu0.b32.end [16/16] %v1886, 128
        %v1937 = vpop.trf.xlu0
        %v1938 = vpop.trf.xlu0
        %v1939 = vpop.trf.xlu0
        %v1940 = vpop.trf.xlu0
        %v1941 = vpop.trf.xlu0
        %v1942 = vpop.trf.xlu0
        %v1943 = vpop.trf.xlu0
        %v1944 = vpop.trf.xlu0
        %v1945 = vpop.trf.xlu0
        %v1946 = vpop.trf.xlu0
        %v1947 = vpop.trf.xlu0
        %v1948 = vpop.trf.xlu0
        %v1949 = vpop.trf.xlu0
        %v1950 = vpop.trf.xlu0
        %v1951 = vpop.trf.xlu0
        %v1952 = vpop.trf.xlu0
        %v1953 = vld [vmem:[%s620] sm:$0x1]
        %v1955 = vlaneseq
        %v1956 = vshrl.u32 %v1955, 7
        %v1957 = vsub.s32 0, %v1956
        %v1958 = vrot.slane %v1953, %v1957
        %v1960 = vadd.f32 %v1905, %v1958
        %v1961 = vadd.f32 %v1906, %v1958
        %v1962 = vadd.f32 %v1907, %v1958
        %v1963 = vadd.f32 %v1908, %v1958
        %v1964 = vadd.f32 %v1909, %v1958
        %v1965 = vadd.f32 %v1910, %v1958
        %v1966 = vadd.f32 %v1911, %v1958
        %v1967 = vadd.f32 %v1912, %v1958
        %v1968 = vadd.f32 %v1913, %v1958
        %v1969 = vadd.f32 %v1914, %v1958
        %v1970 = vadd.f32 %v1915, %v1958
        %v1971 = vadd.f32 %v1916, %v1958
        %v1972 = vadd.f32 %v1917, %v1958
        %v1973 = vadd.f32 %v1918, %v1958
        %v1974 = vadd.f32 %v1919, %v1958
        %v1975 = vadd.f32 %v1920, %v1958
        %v1976 = vadd.f32 %v1937, %v1958
        %v1977 = vadd.f32 %v1938, %v1958
        %v1978 = vadd.f32 %v1939, %v1958
        %v1979 = vadd.f32 %v1940, %v1958
        %v1980 = vadd.f32 %v1941, %v1958
        %v1981 = vadd.f32 %v1942, %v1958
        %v1982 = vadd.f32 %v1943, %v1958
        %v1983 = vadd.f32 %v1944, %v1958
        %v1984 = vadd.f32 %v1945, %v1958
        %v1985 = vadd.f32 %v1946, %v1958
        %v1986 = vadd.f32 %v1947, %v1958
        %v1987 = vadd.f32 %v1948, %v1958
        %v1988 = vadd.f32 %v1949, %v1958
        %v1989 = vadd.f32 %v1950, %v1958
        %v1990 = vadd.f32 %v1951, %v1958
        %v1991 = vadd.f32 %v1952, %v1958
        %1992 = vst [vmem:[%s605] sm:$0xff] %v1960
        %1993 = vst [vmem:[%s605 + $0x8] sm:$0xff] %v1961
        %1994 = vst [vmem:[%s605 + $0x10] sm:$0xff] %v1962
        %1995 = vst [vmem:[%s605 + $0x18] sm:$0xff] %v1963
        %1996 = vst [vmem:[%s605 + $0x20] sm:$0xff] %v1964
        %1997 = vst [vmem:[%s605 + $0x28] sm:$0xff] %v1965
        %1998 = vst [vmem:[%s605 + $0x30] sm:$0xff] %v1966
        %1999 = vst [vmem:[%s605 + $0x38] sm:$0xff] %v1967
        %2000 = vst [vmem:[%s605 + $0x40] sm:$0xff] %v1968
        %2001 = vst [vmem:[%s605 + $0x48] sm:$0xff] %v1969
        %2002 = vst [vmem:[%s605 + $0x50] sm:$0xff] %v1970
        %2003 = vst [vmem:[%s605 + $0x58] sm:$0xff] %v1971
        %2004 = vst [vmem:[%s605 + $0x60] sm:$0xff] %v1972
        %2005 = vst [vmem:[%s605 + $0x68] sm:$0xff] %v1973
        %2006 = vst [vmem:[%s605 + $0x70] sm:$0xff] %v1974
        %2007 = vst [vmem:[%s605 + $0x78] sm:$0xff] %v1975
        %2008 = vst [vmem:[%s612] sm:$0xff] %v1976
        %2009 = vst [vmem:[%s612 + $0x8] sm:$0xff] %v1977
        %2010 = vst [vmem:[%s612 + $0x10] sm:$0xff] %v1978
        %2011 = vst [vmem:[%s612 + $0x18] sm:$0xff] %v1979
        %2012 = vst [vmem:[%s612 + $0x20] sm:$0xff] %v1980
        %2013 = vst [vmem:[%s612 + $0x28] sm:$0xff] %v1981
        %2014 = vst [vmem:[%s612 + $0x30] sm:$0xff] %v1982
        %2015 = vst [vmem:[%s612 + $0x38] sm:$0xff] %v1983
        %2016 = vst [vmem:[%s612 + $0x40] sm:$0xff] %v1984
        %2017 = vst [vmem:[%s612 + $0x48] sm:$0xff] %v1985
        %2018 = vst [vmem:[%s612 + $0x50] sm:$0xff] %v1986
        %2019 = vst [vmem:[%s612 + $0x58] sm:$0xff] %v1987
        %2020 = vst [vmem:[%s612 + $0x60] sm:$0xff] %v1988
        %2021 = vst [vmem:[%s612 + $0x68] sm:$0xff] %v1989
        %2022 = vst [vmem:[%s612 + $0x70] sm:$0xff] %v1990
        %2023 = vst [vmem:[%s612 + $0x78] sm:$0xff] %v1991
        %p2024 = scmp.eq.s32.totalorder %s43, 0
        // Predicated region
        $region85: #{tpu_custom_call.1} parent=59 // pred_check
          %p2025 = pneg %p2024
        $region86: #{tpu_custom_call.1} parent=59 // pred_check_branch
          %2027 = sbr.rel (%p2025) target = $region88
        $region87: #{tpu_custom_call.1} parent=59 // pred_region
          %v2028 = vld [vmem:[%s517] sm:$0x3f]
          %v2029 = vld [vmem:[#allocation8] sm:$0xff]
          %v2030 = vld [vmem:[#allocation8 + $0x8] sm:$0xff]
          %v2031 = vld [vmem:[#allocation8 + $0x10] sm:$0xff]
          %v2032 = vld [vmem:[#allocation8 + $0x18] sm:$0xff]
          %v2033 = vld [vmem:[#allocation8 + $0x20] sm:$0xff]
          %v2034 = vld [vmem:[#allocation8 + $0x28] sm:$0xff]
          %v2035 = vld [vmem:[#allocation8 + $0x30] sm:$0xff]
          %v2036 = vld [vmem:[#allocation8 + $0x38] sm:$0xff]
          %v2037 = vld [vmem:[#allocation8 + $0x40] sm:$0xff]
          %v2038 = vld [vmem:[#allocation8 + $0x48] sm:$0xff]
          %v2039 = vld [vmem:[#allocation8 + $0x50] sm:$0xff]
          %v2040 = vld [vmem:[#allocation8 + $0x58] sm:$0xff]
          %v2041 = vld [vmem:[#allocation8 + $0x60] sm:$0xff]
          %v2042 = vld [vmem:[#allocation8 + $0x68] sm:$0xff]
          %v2043 = vld [vmem:[#allocation8 + $0x70] sm:$0xff]
          %v2044 = vld [vmem:[#allocation8 + $0x78] sm:$0xff]
          %v2045 = vld [vmem:[#allocation8 + $0x80] sm:$0xff]
          %v2046 = vld [vmem:[#allocation8 + $0x88] sm:$0xff]
          %v2047 = vld [vmem:[#allocation8 + $0x90] sm:$0xff]
          %v2048 = vld [vmem:[#allocation8 + $0x98] sm:$0xff]
          %v2049 = vld [vmem:[#allocation8 + $0xa0] sm:$0xff]
          %v2050 = vld [vmem:[#allocation8 + $0xa8] sm:$0xff]
          %v2051 = vld [vmem:[#allocation8 + $0xb0] sm:$0xff]
          %v2052 = vld [vmem:[#allocation8 + $0xb8] sm:$0xff]
          %v2053 = vld [vmem:[#allocation8 + $0xc0] sm:$0xff]
          %v2054 = vld [vmem:[#allocation8 + $0xc8] sm:$0xff]
          %v2055 = vld [vmem:[#allocation8 + $0xd0] sm:$0xff]
          %v2056 = vld [vmem:[#allocation8 + $0xd8] sm:$0xff]
          %v2057 = vld [vmem:[#allocation8 + $0xe0] sm:$0xff]
          %v2058 = vld [vmem:[#allocation8 + $0xe8] sm:$0xff]
          %v2059 = vld [vmem:[#allocation8 + $0xf0] sm:$0xff]
          %v2060 = vld [vmem:[#allocation8 + $0xf8] sm:$0xff]
          %v2061 = vld [vmem:[#allocation8 + $0x100] sm:$0xff]
          %v2062 = vld [vmem:[#allocation8 + $0x108] sm:$0xff]
          %v2063 = vld [vmem:[#allocation8 + $0x110] sm:$0xff]
          %v2064 = vld [vmem:[#allocation8 + $0x118] sm:$0xff]
          %v2065 = vld [vmem:[#allocation8 + $0x120] sm:$0xff]
          %v2066 = vld [vmem:[#allocation8 + $0x128] sm:$0xff]
          %v2067 = vld [vmem:[#allocation8 + $0x130] sm:$0xff]
          %v2068 = vld [vmem:[#allocation8 + $0x138] sm:$0xff]
          %v2069 = vld [vmem:[#allocation8 + $0x140] sm:$0xff]
          %v2070 = vld [vmem:[#allocation8 + $0x148] sm:$0xff]
          %v2071 = vld [vmem:[#allocation8 + $0x150] sm:$0xff]
          %v2072 = vld [vmem:[#allocation8 + $0x158] sm:$0xff]
          %v2073 = vld [vmem:[#allocation8 + $0x160] sm:$0xff]
          %v2074 = vld [vmem:[#allocation8 + $0x168] sm:$0xff]
          %v2075 = vld [vmem:[#allocation8 + $0x170] sm:$0xff]
          %v2076 = vld [vmem:[#allocation8 + $0x178] sm:$0xff]
          %v2077 = vld [vmem:[#allocation8 + $0x180] sm:$0xff]
          %v2078 = vld [vmem:[#allocation8 + $0x188] sm:$0xff]
          %v2079 = vld [vmem:[#allocation8 + $0x190] sm:$0xff]
          %v2080 = vld [vmem:[#allocation8 + $0x198] sm:$0xff]
          %v2081 = vld [vmem:[#allocation8 + $0x1a0] sm:$0xff]
          %v2082 = vld [vmem:[#allocation8 + $0x1a8] sm:$0xff]
          %v2083 = vld [vmem:[#allocation8 + $0x1b0] sm:$0xff]
          %v2084 = vld [vmem:[#allocation8 + $0x1b8] sm:$0xff]
          %v2085 = vld [vmem:[#allocation8 + $0x1c0] sm:$0xff]
          %v2086 = vld [vmem:[#allocation8 + $0x1c8] sm:$0xff]
          %v2087 = vld [vmem:[#allocation8 + $0x1d0] sm:$0xff]
          %v2088 = vld [vmem:[#allocation8 + $0x1d8] sm:$0xff]
          %v2089 = vld [vmem:[#allocation8 + $0x1e0] sm:$0xff]
          %v2090 = vld [vmem:[#allocation8 + $0x1e8] sm:$0xff]
          %v2091 = vld [vmem:[#allocation8 + $0x1f0] sm:$0xff]
          %v2092 = vld [vmem:[#allocation8 + $0x1f8] sm:$0xff]
          %v2093 = vld [vmem:[#allocation8 + $0x200] sm:$0xff]
          %v2094 = vld [vmem:[#allocation8 + $0x208] sm:$0xff]
          %v2095 = vld [vmem:[#allocation8 + $0x210] sm:$0xff]
          %v2096 = vld [vmem:[#allocation8 + $0x218] sm:$0xff]
          %v2097 = vld [vmem:[#allocation8 + $0x220] sm:$0xff]
          %v2098 = vld [vmem:[#allocation8 + $0x228] sm:$0xff]
          %v2099 = vld [vmem:[#allocation8 + $0x230] sm:$0xff]
          %v2100 = vld [vmem:[#allocation8 + $0x238] sm:$0xff]
          %v2101 = vld [vmem:[#allocation8 + $0x240] sm:$0xff]
          %v2102 = vld [vmem:[#allocation8 + $0x248] sm:$0xff]
          %v2103 = vld [vmem:[#allocation8 + $0x250] sm:$0xff]
          %v2104 = vld [vmem:[#allocation8 + $0x258] sm:$0xff]
          %v2105 = vld [vmem:[#allocation8 + $0x260] sm:$0xff]
          %v2106 = vld [vmem:[#allocation8 + $0x268] sm:$0xff]
          %v2107 = vld [vmem:[#allocation8 + $0x270] sm:$0xff]
          %v2108 = vld [vmem:[#allocation8 + $0x278] sm:$0xff]
          %v2109 = vld [vmem:[#allocation8 + $0x280] sm:$0xff]
          %v2110 = vld [vmem:[#allocation8 + $0x288] sm:$0xff]
          %v2111 = vld [vmem:[#allocation8 + $0x290] sm:$0xff]
          %v2112 = vld [vmem:[#allocation8 + $0x298] sm:$0xff]
          %v2113 = vld [vmem:[#allocation8 + $0x2a0] sm:$0xff]
          %v2114 = vld [vmem:[#allocation8 + $0x2a8] sm:$0xff]
          %v2115 = vld [vmem:[#allocation8 + $0x2b0] sm:$0xff]
          %v2116 = vld [vmem:[#allocation8 + $0x2b8] sm:$0xff]
          %v2117 = vld [vmem:[#allocation8 + $0x2c0] sm:$0xff]
          %v2118 = vld [vmem:[#allocation8 + $0x2c8] sm:$0xff]
          %v2119 = vld [vmem:[#allocation8 + $0x2d0] sm:$0xff]
          %v2120 = vld [vmem:[#allocation8 + $0x2d8] sm:$0xff]
          %v2121 = vld [vmem:[#allocation8 + $0x2e0] sm:$0xff]
          %v2122 = vld [vmem:[#allocation8 + $0x2e8] sm:$0xff]
          %v2123 = vld [vmem:[#allocation8 + $0x2f0] sm:$0xff]
          %v2124 = vld [vmem:[#allocation8 + $0x2f8] sm:$0xff]
          %v2125 = vld [vmem:[%s4] sm:$0x1]
          %v2127 = vlaneseq
          %v2128 = vshrl.u32 %v2127, 7
          %v2129 = vsub.s32 0, %v2128
          %v2130 = vrot.slane %v2028, %v2129
          %v2131 = vlaneseq
          %v2132 = vshrl.u32 %v2131, 7
          %v2133 = vsub.s32 1, %v2132
          %v2134 = vrot.slane %v2028, %v2133
          %v2135 = vlaneseq
          %v2136 = vshrl.u32 %v2135, 7
          %v2137 = vsub.s32 2, %v2136
          %v2138 = vrot.slane %v2028, %v2137
          %v2139 = vlaneseq
          %v2140 = vshrl.u32 %v2139, 7
          %v2141 = vsub.s32 3, %v2140
          %v2142 = vrot.slane %v2028, %v2141
          %v2143 = vlaneseq
          %v2144 = vshrl.u32 %v2143, 7
          %v2145 = vsub.s32 4, %v2144
          %v2146 = vrot.slane %v2028, %v2145
          %v2147 = vlaneseq
          %v2148 = vshrl.u32 %v2147, 7
          %v2149 = vsub.s32 5, %v2148
          %v2150 = vrot.slane %v2028, %v2149
          %2157 = vmatprep.subr.mxu0 0.0
          %2158 = vmatpush1.msra.mxu0 %v2029
          %2159 = vmatprep.subr.mxu0 0.0
          %2160 = vmatpush1.msra.mxu0 %v2030
          %2161 = vmatprep.subr.mxu0 0.0
          %2162 = vmatpush1.msra.mxu0 %v2031
          %2163 = vmatprep.subr.mxu0 0.0
          %2164 = vmatpush1.msra.mxu0 %v2032
          %2165 = vmatprep.subr.mxu0 0.0
          %2166 = vmatpush1.msra.mxu0 %v2033
          %2167 = vmatprep.subr.mxu0 0.0
          %2168 = vmatpush1.msra.mxu0 %v2034
          %2169 = vmatprep.subr.mxu0 0.0
          %2170 = vmatpush1.msra.mxu0 %v2035
          %2171 = vmatprep.subr.mxu0 0.0
          %2172 = vmatpush1.msra.mxu0 %v2036
          %2173 = vmatprep.subr.mxu0 0.0
          %2174 = vmatpush1.msra.mxu0 %v2037
          %2175 = vmatprep.subr.mxu0 0.0
          %2176 = vmatpush1.msra.mxu0 %v2038
          %2177 = vmatprep.subr.mxu0 0.0
          %2178 = vmatpush1.msra.mxu0 %v2039
          %2179 = vmatprep.subr.mxu0 0.0
          %2180 = vmatpush1.msra.mxu0 %v2040
          %2181 = vmatprep.subr.mxu0 0.0
          %2182 = vmatpush1.msra.mxu0 %v2041
          %2183 = vmatprep.subr.mxu0 0.0
          %2184 = vmatpush1.msra.mxu0 %v2042
          %2185 = vmatprep.subr.mxu0 0.0
          %2186 = vmatpush1.msra.mxu0 %v2043
          %2187 = vmatprep.subr.mxu0 0.0
          %2188 = vmatpush1.msra.mxu0 %v2044
          %2189 = vmatprep.subr.mxu0 0.0
          %2190 = vmatpush1.msra.mxu0 %v2045
          %2191 = vmatprep.subr.mxu0 0.0
          %2192 = vmatpush1.msra.mxu0 %v2046
          %2193 = vmatprep.subr.mxu0 0.0
          %2194 = vmatpush1.msra.mxu0 %v2047
          %2195 = vmatprep.subr.mxu0 0.0
          %2196 = vmatpush1.msra.mxu0 %v2048
          %2197 = vmatprep.subr.mxu0 0.0
          %2198 = vmatpush1.msra.mxu0 %v2049
          %2199 = vmatprep.subr.mxu0 0.0
          %2200 = vmatpush1.msra.mxu0 %v2050
          %2201 = vmatprep.subr.mxu0 0.0
          %2202 = vmatpush1.msra.mxu0 %v2051
          %2203 = vmatprep.subr.mxu0 0.0
          %2204 = vmatpush1.msra.mxu0 %v2052
          %2205 = vmatprep.subr.mxu0 0.0
          %2206 = vmatpush1.msra.mxu0 %v2053
          %2207 = vmatprep.subr.mxu0 0.0
          %2208 = vmatpush1.msra.mxu0 %v2054
          %2209 = vmatprep.subr.mxu0 0.0
          %2210 = vmatpush1.msra.mxu0 %v2055
          %2211 = vmatprep.subr.mxu0 0.0
          %2212 = vmatpush1.msra.mxu0 %v2056
          %2213 = vmatprep.subr.mxu0 0.0
          %2214 = vmatpush1.msra.mxu0 %v2057
          %2215 = vmatprep.subr.mxu0 0.0
          %2216 = vmatpush1.msra.mxu0 %v2058
          %2217 = vmatprep.subr.mxu0 0.0
          %2218 = vmatpush1.msra.mxu0 %v2059
          %2219 = vmatprep.subr.mxu0 0.0
          %2220 = vmatpush1.msra.mxu0 %v2060
          %2221 = vmatprep.mubr.f32.mxu0 %v2134
          %2222 = vmatmul.mubr.f32.gmra.mrb[0].mxu0 %v2130
          %v2223 = vpop.f32.mrb[0].mxu0
          %v2224 = vadd.f32 %v2125, %v2223
          %v2225 = vpop.f32.mrb[0].mxu0
          %2226 = vdwg.mxu0
          %2227 = vmatprep.subr.mxu0 0.0
          %2228 = vmatpush1.msra.mxu0 %v2061
          %2229 = vmatprep.subr.mxu0 0.0
          %2230 = vmatpush1.msra.mxu0 %v2062
          %2231 = vmatprep.subr.mxu0 0.0
          %2232 = vmatpush1.msra.mxu0 %v2063
          %2233 = vmatprep.subr.mxu0 0.0
          %2234 = vmatpush1.msra.mxu0 %v2064
          %2235 = vmatprep.subr.mxu0 0.0
          %2236 = vmatpush1.msra.mxu0 %v2065
          %2237 = vmatprep.subr.mxu0 0.0
          %2238 = vmatpush1.msra.mxu0 %v2066
          %2239 = vmatprep.subr.mxu0 0.0
          %2240 = vmatpush1.msra.mxu0 %v2067
          %2241 = vmatprep.subr.mxu0 0.0
          %2242 = vmatpush1.msra.mxu0 %v2068
          %2243 = vmatprep.subr.mxu0 0.0
          %2244 = vmatpush1.msra.mxu0 %v2069
          %2245 = vmatprep.subr.mxu0 0.0
          %2246 = vmatpush1.msra.mxu0 %v2070
          %2247 = vmatprep.subr.mxu0 0.0
          %2248 = vmatpush1.msra.mxu0 %v2071
          %2249 = vmatprep.subr.mxu0 0.0
          %2250 = vmatpush1.msra.mxu0 %v2072
          %2251 = vmatprep.subr.mxu0 0.0
          %2252 = vmatpush1.msra.mxu0 %v2073
          %2253 = vmatprep.subr.mxu0 0.0
          %2254 = vmatpush1.msra.mxu0 %v2074
          %2255 = vmatprep.subr.mxu0 0.0
          %2256 = vmatpush1.msra.mxu0 %v2075
          %2257 = vmatprep.subr.mxu0 0.0
          %2258 = vmatpush1.msra.mxu0 %v2076
          %2259 = vmatprep.subr.mxu0 0.0
          %2260 = vmatpush1.msra.mxu0 %v2077
          %2261 = vmatprep.subr.mxu0 0.0
          %2262 = vmatpush1.msra.mxu0 %v2078
          %2263 = vmatprep.subr.mxu0 0.0
          %2264 = vmatpush1.msra.mxu0 %v2079
          %2265 = vmatprep.subr.mxu0 0.0
          %2266 = vmatpush1.msra.mxu0 %v2080
          %2267 = vmatprep.subr.mxu0 0.0
          %2268 = vmatpush1.msra.mxu0 %v2081
          %2269 = vmatprep.subr.mxu0 0.0
          %2270 = vmatpush1.msra.mxu0 %v2082
          %2271 = vmatprep.subr.mxu0 0.0
          %2272 = vmatpush1.msra.mxu0 %v2083
          %2273 = vmatprep.subr.mxu0 0.0
          %2274 = vmatpush1.msra.mxu0 %v2084
          %2275 = vmatprep.subr.mxu0 0.0
          %2276 = vmatpush1.msra.mxu0 %v2085
          %2277 = vmatprep.subr.mxu0 0.0
          %2278 = vmatpush1.msra.mxu0 %v2086
          %2279 = vmatprep.subr.mxu0 0.0
          %2280 = vmatpush1.msra.mxu0 %v2087
          %2281 = vmatprep.subr.mxu0 0.0
          %2282 = vmatpush1.msra.mxu0 %v2088
          %2283 = vmatprep.subr.mxu0 0.0
          %2284 = vmatpush1.msra.mxu0 %v2089
          %2285 = vmatprep.subr.mxu0 0.0
          %2286 = vmatpush1.msra.mxu0 %v2090
          %2287 = vmatprep.subr.mxu0 0.0
          %2288 = vmatpush1.msra.mxu0 %v2091
          %2289 = vmatprep.subr.mxu0 0.0
          %2290 = vmatpush1.msra.mxu0 %v2092
          %2291 = vmatprep.mubr.f32.mxu0 %v2142
          %2292 = vmatmul.mubr.f32.gmra.mrb[0].mxu0 %v2138
          %v2293 = vpop.f32.mrb[0].mxu0
          %v2294 = vadd.f32 %v2224, %v2293
          %v2295 = vpop.f32.mrb[0].mxu0
          %2296 = vdwg.mxu0
          %2297 = vmatprep.subr.mxu0 0.0
          %2298 = vmatpush1.msra.mxu0 %v2093
          %2299 = vmatprep.subr.mxu0 0.0
          %2300 = vmatpush1.msra.mxu0 %v2094
          %2301 = vmatprep.subr.mxu0 0.0
          %2302 = vmatpush1.msra.mxu0 %v2095
          %2303 = vmatprep.subr.mxu0 0.0
          %2304 = vmatpush1.msra.mxu0 %v2096
          %2305 = vmatprep.subr.mxu0 0.0
          %2306 = vmatpush1.msra.mxu0 %v2097
          %2307 = vmatprep.subr.mxu0 0.0
          %2308 = vmatpush1.msra.mxu0 %v2098
          %2309 = vmatprep.subr.mxu0 0.0
          %2310 = vmatpush1.msra.mxu0 %v2099
          %2311 = vmatprep.subr.mxu0 0.0
          %2312 = vmatpush1.msra.mxu0 %v2100
          %2313 = vmatprep.subr.mxu0 0.0
          %2314 = vmatpush1.msra.mxu0 %v2101
          %2315 = vmatprep.subr.mxu0 0.0
          %2316 = vmatpush1.msra.mxu0 %v2102
          %2317 = vmatprep.subr.mxu0 0.0
          %2318 = vmatpush1.msra.mxu0 %v2103
          %2319 = vmatprep.subr.mxu0 0.0
          %2320 = vmatpush1.msra.mxu0 %v2104
          %2321 = vmatprep.subr.mxu0 0.0
          %2322 = vmatpush1.msra.mxu0 %v2105
          %2323 = vmatprep.subr.mxu0 0.0
          %2324 = vmatpush1.msra.mxu0 %v2106
          %2325 = vmatprep.subr.mxu0 0.0
          %2326 = vmatpush1.msra.mxu0 %v2107
          %2327 = vmatprep.subr.mxu0 0.0
          %2328 = vmatpush1.msra.mxu0 %v2108
          %2329 = vmatprep.subr.mxu0 0.0
          %2330 = vmatpush1.msra.mxu0 %v2109
          %2331 = vmatprep.subr.mxu0 0.0
          %2332 = vmatpush1.msra.mxu0 %v2110
          %2333 = vmatprep.subr.mxu0 0.0
          %2334 = vmatpush1.msra.mxu0 %v2111
          %2335 = vmatprep.subr.mxu0 0.0
          %2336 = vmatpush1.msra.mxu0 %v2112
          %2337 = vmatprep.subr.mxu0 0.0
          %2338 = vmatpush1.msra.mxu0 %v2113
          %2339 = vmatprep.subr.mxu0 0.0
          %2340 = vmatpush1.msra.mxu0 %v2114
          %2341 = vmatprep.subr.mxu0 0.0
          %2342 = vmatpush1.msra.mxu0 %v2115
          %2343 = vmatprep.subr.mxu0 0.0
          %2344 = vmatpush1.msra.mxu0 %v2116
          %2345 = vmatprep.subr.mxu0 0.0
          %2346 = vmatpush1.msra.mxu0 %v2117
          %2347 = vmatprep.subr.mxu0 0.0
          %2348 = vmatpush1.msra.mxu0 %v2118
          %2349 = vmatprep.subr.mxu0 0.0
          %2350 = vmatpush1.msra.mxu0 %v2119
          %2351 = vmatprep.subr.mxu0 0.0
          %2352 = vmatpush1.msra.mxu0 %v2120
          %2353 = vmatprep.subr.mxu0 0.0
          %2354 = vmatpush1.msra.mxu0 %v2121
          %2355 = vmatprep.subr.mxu0 0.0
          %2356 = vmatpush1.msra.mxu0 %v2122
          %2357 = vmatprep.subr.mxu0 0.0
          %2358 = vmatpush1.msra.mxu0 %v2123
          %2359 = vmatprep.subr.mxu0 0.0
          %2360 = vmatpush1.msra.mxu0 %v2124
          %2361 = vmatprep.mubr.f32.mxu0 %v2150
          %2362 = vmatmul.mubr.f32.gmra.mrb[0].mxu0 %v2146
          %v2363 = vpop.f32.mrb[0].mxu0
          %v2364 = vadd.f32 %v2294, %v2363
          %v2365 = vpop.f32.mrb[0].mxu0
          %2366 = vdwg.mxu0
          %2367 = vst [vmem:[%s598] sm:$0x1] %v2364
        $region88: #{tpu_custom_call.1} parent=59 // pred_fallthru
          _
        %s2368 = sand.u32 %s294, 1
        %s2369 = scalar_lea.sflag [#allocation4], %s2368
        %s2370 = sand.u32 %s294, 1
        %s2371 = scalar_lea.vmem [#allocation13], %s2370
        %s2372 = sand.u32 %s38, 1
        %s2373 = scalar_lea.sflag [#allocation15], %s2372
        %s2374 = sand.u32 %s322, 1
        %s2375 = smul.addr %s2374, 128
        %s2376 = scalar_lea.vmem [#allocation14], %s2375
        %s2377 = sand.u32 %s38, 1
        %s2378 = scalar_lea.sflag [#allocation15], %s2377
        %s2379 = sand.u32 %s350, 1
        %s2380 = smul.addr %s2379, 128
        %s2381 = scalar_lea.vmem [#allocation16], %s2380
        // Predicated region
        $region89: #{tpu_custom_call.1} parent=59 // pred_check
          %p2382 = pneg %p304
        $region90: #{tpu_custom_call.1} parent=59 // pred_check_branch
          %2384 = sbr.rel (%p2382) target = $region92
        $region91: #{tpu_custom_call.1} parent=59 // pred_region
          %s2386 = ssub.s32 16, 16
          %2387 = vsyncadd %s2369, %s2386
          %s2388 = smul.addr %s42, 16
          %s2389 = scalar_lea.hbm %s10, %s2388
          %s2391 = sshll.u32 %s2371, 4
          %s2392 = int_to_ptr.vmem [resolvable:$true] %s2391
          %2394 = dma.vmem_to_hbm [thread:$0]  %s2392, 16, %s2389, %s2369
        $region92: #{tpu_custom_call.1} parent=59 // pred_fallthru
          _
        // Predicated region
        $region93: #{tpu_custom_call.1} parent=59 // pred_check
          %p2395 = pneg %p332
        $region94: #{tpu_custom_call.1} parent=59 // pred_check_branch
          %2397 = sbr.rel (%p2395) target = $region96
        $region95: #{tpu_custom_call.1} parent=59 // pred_region
          %s2399 = ssub.s32 2048, 2048
          %2400 = vsyncadd %s2373, %s2399
          %s2401 = smul.addr %s42, 16
          %s2402 = sadd.s32 %s43, %s2401
          %s2403 = smul.addr %s2402, 128
          %s2404 = scalar_lea.hbm %s11, %s2403
          %s2405 = sshll.u32 %s2376, 4
          %s2406 = int_to_ptr.vmem [resolvable:$true] %s2405
          %2411 = dma.vmem_to_hbm [thread:$0]  %s2406, 2048, %s2404, %s2373, 128, 128, 8
        $region96: #{tpu_custom_call.1} parent=59 // pred_fallthru
          _
        // Predicated region
        $region97: #{tpu_custom_call.1} parent=59 // pred_check
          %p2412 = pneg %p360
        $region98: #{tpu_custom_call.1} parent=59 // pred_check_branch
          %2414 = sbr.rel (%p2412) target = $region100
        $region99: #{tpu_custom_call.1} parent=59 // pred_region
          %s2416 = ssub.s32 2048, 2048
          %2417 = vsyncadd %s2378, %s2416
          %s2418 = smul.addr %s42, 16
          %s2419 = sadd.s32 %s43, %s2418
          %s2420 = smul.addr %s2419, 128
          %s2421 = scalar_lea.hbm %s12, %s2420
          %s2422 = sshll.u32 %s2381, 4
          %s2423 = int_to_ptr.vmem [resolvable:$true] %s2422
          %2428 = dma.vmem_to_hbm [thread:$0]  %s2423, 2048, %s2421, %s2378, 128, 128, 8
        $region100: #{tpu_custom_call.1} parent=59 // pred_fallthru
          _
      $region60: #{tpu_custom_call.1} parent=5 // pred_fallthru
        _
      %p2429 = scmp.le.s32.totalorder 2, %s33
      // Predicated region
      $region101: #{tpu_custom_call.1} parent=5 // pred_check
        %p2430 = pneg %p2429
      $region102: #{tpu_custom_call.1} parent=5 // pred_check_branch
        %2432 = sbr.rel (%p2430) target = $region104
      $region103: #{tpu_custom_call.1} parent=5 // pred_region
        %s2433 = ssub.s32 %s33, 2
        // Predicated region
        $region105: #{tpu_custom_call.1} parent=103 // pred_check
          %p2434 = pneg %p310
        $region106: #{tpu_custom_call.1} parent=103 // pred_check_branch
          %2436 = sbr.rel (%p2434) target = $region108
        $region107: #{tpu_custom_call.1} parent=103 // pred_region
          %s2437 = sand.u32 %s295, 1
          %s2438 = scalar_lea.sflag [#allocation4], %s2437
          %s2439 = sand.u32 %s295, 1
          %s2440 = scalar_lea.vmem [#allocation13], %s2439
          %2441 = dma.done %s2438, 16
        $region108: #{tpu_custom_call.1} parent=103 // pred_fallthru
          _
        // Predicated region
        $region109: #{tpu_custom_call.1} parent=103 // pred_check
          %p2442 = pneg %p338
        $region110: #{tpu_custom_call.1} parent=103 // pred_check_branch
          %2444 = sbr.rel (%p2442) target = $region112
        $region111: #{tpu_custom_call.1} parent=103 // pred_region
          %s2445 = sand.u32 %s39, 1
          %s2446 = scalar_lea.sflag [#allocation15], %s2445
          %s2447 = sand.u32 %s323, 1
          %s2448 = smul.addr %s2447, 128
          %s2449 = scalar_lea.vmem [#allocation14], %s2448
          %2450 = dma.done %s2446, 2048
        $region112: #{tpu_custom_call.1} parent=103 // pred_fallthru
          _
        // Predicated region
        $region113: #{tpu_custom_call.1} parent=103 // pred_check
          %p2451 = pneg %p366
        $region114: #{tpu_custom_call.1} parent=103 // pred_check_branch
          %2453 = sbr.rel (%p2451) target = $region116
        $region115: #{tpu_custom_call.1} parent=103 // pred_region
          %s2454 = sand.u32 %s39, 1
          %s2455 = scalar_lea.sflag [#allocation15], %s2454
          %s2456 = sand.u32 %s351, 1
          %s2457 = smul.addr %s2456, 128
          %s2458 = scalar_lea.vmem [#allocation16], %s2457
          %2459 = dma.done %s2455, 2048
        $region116: #{tpu_custom_call.1} parent=103 // pred_fallthru
          _
      $region104: #{tpu_custom_call.1} parent=5 // pred_fallthru
        _
    $region6: #{tpu_custom_call.1} parent=1 // loop_footer
      %s37 = sadd.s32 1, %s33
    $region7: #{tpu_custom_call.1} parent=1 // loop_footer_branch
      %32 = sbr.rel target = $region3
    $region8: #{tpu_custom_call.1} parent=1 // loop_exit
      _
    %2460 = vsyncpa [#allocation3], 1
    %s2461 = scalar_lea.sflag [#allocation3], 1
    %2462 = vsyncpa %s2461, 1
    %2463 = vsyncpa [#allocation6], 1
    %s2464 = scalar_lea.sflag [#allocation6], 1
    %2465 = vsyncpa %s2464, 1
    %2466 = vsyncpa [#allocation9], 1
    %2467 = vsyncpa [#allocation12], 1
    %2468 = vsyncpa [#allocation4], 1
    %s2469 = scalar_lea.sflag [#allocation4], 1
    %2470 = vsyncpa %s2469, 1
    %2471 = vsyncpa [#allocation15], 1
    %s2472 = scalar_lea.sflag [#allocation15], 1
    %2473 = vsyncpa %s2472, 1

</llo_original>
